<compile_context>
chip_gen: v7x
topology: tpu7x:2x2x1
jax: 0.10.0
libtpu: 0.0.40
codegen_flags: <defaults>
</compile_context>

<pallas_src>
import functools

import numpy as np
import jax
import jax.numpy as jnp
from jax import lax
from jax.experimental import pallas as pl
from jax.experimental.pallas import tpu as pltpu


# ----------------------------- in-kernel helpers --------------------------- #

def _bn_lrelu(y, gamma, beta, inv_count):
    """BatchNorm2d (training batch stats, biased var, eps=1e-5) + LeakyReLU(0.2).

    y: (C, N*S) f32, rows = channels, cols = (sample, spatial) -> per-channel stats
    are plain per-row means.  Two-pass (centered) variance for numerical stability.
    """
    mean = jnp.sum(y, axis=1, keepdims=True) * inv_count           # (C, 1)
    cen = y - mean
    var = jnp.sum(cen * cen, axis=1, keepdims=True) * inv_count    # (C, 1)
    z = gamma * lax.rsqrt(var + 1e-5) * cen + beta
    return jnp.maximum(z, 0.2 * z)          # single vmax instead of compare+select


# ------------------------------ fused kernel ------------------------------- #

def _critic_kernel(p1_ref, w1_ref, b1_ref, gamma1_ref, beta1_ref,
                   gth2_ref, w2_ref, b2_ref, gamma2_ref, beta2_ref,
                   plane3_ref, b3_ref,
                   o_ref, slab_ref,
                   *, n, c1, kk, s2, ns2, inv1, inv2):
    # ---- block 1: ONE batched matmul (c1, K1) x (K1, N*S1), then BN + LeakyReLU ----
    y1 = jnp.dot(w1_ref[...], p1_ref[...],
                 preferred_element_type=jnp.float32) + b1_ref[...]        # (c1, N*S1)
    a1 = _bn_lrelu(y1, gamma1_ref[...], beta1_ref[...], inv1)
    a1b = a1.astype(jnp.bfloat16)                                         # hoisted cast

    # ---- block 2: ONE gather matmul -> K = kk*c1 slab -> ONE conv matmul ----
    # tap_all[c, t*N*S2 + i*S2 + u] = a1[c, i*S1 + pos(t, u)]   (exact one-hot gather)
    tap_all = jnp.dot(a1b, gth2_ref[...], preferred_element_type=jnp.float32)
    for t in range(kk):                       # 8-row (sublane-aligned) slab stores
        slab_ref[t * c1:(t + 1) * c1, :] = tap_all[:, t * ns2:(t + 1) * ns2]
    slab_b = slab_ref[...].astype(jnp.bfloat16)                           # hoisted cast
    y2 = jnp.dot(w2_ref[...], slab_b,
                 preferred_element_type=jnp.float32) + b2_ref[...]        # (c2, N*S2)
    a2 = _bn_lrelu(y2, gamma2_ref[...], beta2_ref[...], inv2)

    # ---- block 3 (c_out=1, 1x1 output/sample): pure f32 weighted reduction ----
    prod = a2 * plane3_ref[...]                                           # (c2, N*S2)
    for i in range(n):
        blk = prod[:, i * s2:(i + 1) * s2]
        v = jnp.sum(jnp.sum(blk, axis=1, keepdims=True), axis=0, keepdims=True)
        o_ref[:, i:i + 1] = v + b3_ref[...]


# ------------------------------- JAX glue ---------------------------------- #

def _out_hw(h, w, kh, kw, stride):
    return (h - kh) // stride + 1, (w - kw) // stride + 1


def _full_spec(shape):
    return pl.BlockSpec(shape, lambda i, _nd=len(shape): (0,) * _nd)


def _im2col_cols(x_nchw, kh, kw, stride):
    """(N, C, H, W) -> (C*KH*KW, N*OH*OW).  Rows ordered (c, ki, kj) to match
    PyTorch weight.reshape(OC, C*KH*KW); cols ordered (sample, spatial)."""
    n, c, h, w = x_nchw.shape
    oh, ow = _out_hw(h, w, kh, kw, stride)
    taps = []
    for ki in range(kh):
        for kj in range(kw):
            taps.append(x_nchw[:, :, ki:ki + stride * (oh - 1) + 1:stride,
                                     kj:kj + stride * (ow - 1) + 1:stride])
    p = jnp.stack(taps, axis=2)                           # (N, C, KK, OH, OW)
    p = p.reshape(n, c * kh * kw, oh * ow)                # rows (c, t) per sample
    return jnp.transpose(p, (1, 0, 2)).reshape(c * kh * kw, n * oh * ow)


def _block_gather_matrix(n, h_in, w_in, kh, kw, stride):
    """One-hot (N*S_in, KK*N*S_out) matrix; column (t, i, u) selects input pixel
    (stride*a+ki, stride*b+kj) of sample i, so dot(act (C, N*S_in), G) gathers every
    tap for the whole batch in ONE matmul.  Block-diagonal over samples."""
    oh, ow = _out_hw(h_in, w_in, kh, kw, stride)
    s_in, s_out = h_in * w_in, oh * ow
    g = np.zeros((n * s_in, kh * kw * n * s_out), np.float32)
    for ki in range(kh):
        for kj in range(kw):
            t = ki * kw + kj
            for i in range(n):
                for a in range(oh):
                    for b in range(ow):
                        g[i * s_in + (stride * a + ki) * w_in + (stride * b + kj),
                          (t * n + i) * s_out + a * ow + b] = 1.0
    return jnp.asarray(g, jnp.bfloat16)


def critic_forward(image_nchw, params):
    """image_nchw: (N, C, H, W) f32 -> (N, 1) f32 (final 1x1 critic score)."""
    N, IC, H, W = image_nchw.shape
    KH = KW = 4
    KK = KH * KW
    STRIDE = 2

    C1 = params["w1"].shape[0]
    C2 = params["w2"].shape[0]
    C3 = params["w3"].shape[0]

    OH1, OW1 = _out_hw(H, W, KH, KW, STRIDE)
    OH2, OW2 = _out_hw(OH1, OW1, KH, KW, STRIDE)
    OH3, OW3 = _out_hw(OH2, OW2, KH, KW, STRIDE)
    S1, S2, S3 = OH1 * OW1, OH2 * OW2, OH3 * OW3
    K1 = IC * KK

    # Block 3 is implemented as a weighted reduction (single channel, 1x1 output).
    # TODO(synk): a general C3/S3 final layer would reuse block 2's gather+matmul path.
    assert C3 == 1 and S3 == 1, "final layer specialised to single-channel 1x1 output"

    # Block-1 im2col built in XLA from the raw image (im_chan*16 rows -> tiny).
    p1 = _im2col_cols(image_nchw, KH, KW, STRIDE).astype(jnp.bfloat16)    # (K1, N*S1)

    # One-hot batched tap-gather matrix for block 2.
    gth2 = _block_gather_matrix(N, OH1, OW1, KH, KW, STRIDE)              # (N*S1, KK*N*S2)

    # Conv weights as MXU-friendly 2D bf16 matrices (f32 accumulation in the kernel).
    w1m = params["w1"].reshape(C1, K1).astype(jnp.bfloat16)               # cols (ic, ki, kj)
    w2m = jnp.transpose(params["w2"], (0, 2, 3, 1)).reshape(C2, KK * C1).astype(jnp.bfloat16)

    # Block-3 weight plane: w3's 4x4 taps scattered into their 5x5 spatial slots,
    # tiled per sample, so block 3 is an elementwise multiply + reduction in f32.
    w3p = jnp.pad(params["w3"][0].astype(jnp.float32),
                  ((0, 0), (0, OH2 - KH), (0, OW2 - KW))).reshape(C2, S2)
    plane3 = jnp.tile(w3p, (1, N))                                        # (C2, N*S2)

    b1 = params["b1"].reshape(C1, 1).astype(jnp.float32)
    gamma1 = params["g1"].reshape(C1, 1).astype(jnp.float32)
    beta1 = params["be1"].reshape(C1, 1).astype(jnp.float32)
    b2 = params["b2"].reshape(C2, 1).astype(jnp.float32)
    gamma2 = params["g2"].reshape(C2, 1).astype(jnp.float32)
    beta2 = params["be2"].reshape(C2, 1).astype(jnp.float32)
    b3 = params["b3"].reshape(1, 1).astype(jnp.float32)

    inputs = (p1, w1m, b1, gamma1, beta1, gth2, w2m, b2, gamma2, beta2, plane3, b3)

    kernel = functools.partial(
        _critic_kernel, n=N, c1=C1, kk=KK, s2=S2, ns2=N * S2,
        inv1=1.0 / float(N * S1), inv2=1.0 / float(N * S2))

    conv_flops = 2 * (C1 * K1 * N * S1 + C2 * KK * C1 * N * S2)
    gather_flops = 2 * C1 * (N * S1) * (KK * N * S2)
    block3_flops = 3 * C2 * N * S2
    bytes_accessed = sum(int(a.size) * a.dtype.itemsize for a in inputs) + N * 4

    out = pl.pallas_call(
        kernel,
        out_shape=jax.ShapeDtypeStruct((1, N), jnp.float32),
        grid=(1,),
        in_specs=[_full_spec(a.shape) for a in inputs],
        out_specs=_full_spec((1, N)),
        scratch_shapes=[
            pltpu.VMEM((KK * C1, N * S2), jnp.float32),   # K = kk*c1 patch slab (block 2)
        ],
        compiler_params=pltpu.CompilerParams(
            dimension_semantics=("arbitrary",),
            vmem_limit_bytes=32 * 1024 * 1024),
        cost_estimate=pl.CostEstimate(
            flops=int(conv_flops + gather_flops + block3_flops),
            transcendentals=int(C1 + C2),
            bytes_accessed=int(bytes_accessed)),
    )(*inputs)

    # out[0, i] is sample i's score -> (N, 1), same order as PyTorch's .view(N, -1).
    return out.reshape(N, C3 * S3)


# --------------------------- pure-JAX reference ----------------------------- #

def critic_reference(image_nchw, params):
    """Same math: conv1/conv2 with bf16 inputs + f32 accumulation, f32 BatchNorm
    (batch stats, biased var), LeakyReLU(0.2), final conv in full f32."""
    def conv(x, w, b, dtype, precision=None):
        y = lax.conv_general_dilated(
            x.astype(dtype), w.astype(dtype),
            window_strides=(2, 2), padding="VALID",
            dimension_numbers=("NCHW", "OIHW", "NCHW"),
            preferred_element_type=jnp.float32, precision=precision)
        return y + b.reshape(1, -1, 1, 1)

    def bn_lrelu(y, gamma, beta):
        m = jnp.mean(y, axis=(0, 2, 3), keepdims=True)
        v = jnp.mean(jnp.square(y - m), axis=(0, 2, 3), keepdims=True)
        z = gamma.reshape(1, -1, 1, 1) * (y - m) * lax.rsqrt(v + 1e-5) \
            + beta.reshape(1, -1, 1, 1)
        return jnp.maximum(z, 0.2 * z)

    x = bn_lrelu(conv(image_nchw, params["w1"], params["b1"], jnp.bfloat16),
                 params["g1"], params["be1"])
    x = bn_lrelu(conv(x, params["w2"], params["b2"], jnp.bfloat16),
                 params["g2"], params["be2"])
    x = conv(x, params["w3"], params["b3"], jnp.float32,
             precision=lax.Precision.HIGHEST)
    return x.reshape(x.shape[0], -1)


# --------------------------------- main ------------------------------------ #

def init_params(key, im_chan, hidden):
    ks = jax.random.split(key, 10)

    def wn(k, shape, scale=0.05):
        return (scale * jax.random.normal(k, shape)).astype(jnp.float32)

    return {
        "w1": wn(ks[0], (hidden, im_chan, 4, 4)), "b1": wn(ks[1], (hidden,)),
        "g1": 1.0 + wn(ks[2], (hidden,), 0.1), "be1": wn(ks[3], (hidden,), 0.1),
        "w2": wn(ks[4], (2 * hidden, hidden, 4, 4)), "b2": wn(ks[5], (2 * hidden,)),
        "g2": 1.0 + wn(ks[6], (2 * hidden,), 0.1), "be2": wn(ks[7], (2 * hidden,), 0.1),
        "w3": wn(ks[8], (1, 2 * hidden, 4, 4)), "b3": wn(ks[9], (1,)),
    }


if __name__ == "__main__":
    key = jax.random.PRNGKey(0)
    k_in, k_par = jax.random.split(key)

    N, C, H, W = 2, 1, 28, 28          # MNIST-like: 28 -> 13 -> 5 -> 1
    hidden = 8                          # kk*c1 = 128, MXU-native contraction for block 2
    image = jax.random.normal(k_in, (N, C, H, W), jnp.float32)
    params = init_params(k_par, C, hidden)

    out = jax.block_until_ready(critic_forward(image, params))
    ref = jax.block_until_ready(critic_reference(image, params))

    assert out.shape == (N, 1), out.shape
    assert jnp.allclose(out, ref, atol=2e-3, rtol=2e-3), (out, ref)

    print("KERNEL_OK")
</pallas_src>

<mosaic_0001>
module attributes {stable_mosaic.version = 11 : i64} {
  func.func @_critic_kernel(%arg0: i32, %arg1: memref<16x338xbf16, #tpu.memory_space<vmem>>, %arg2: memref<8x16xbf16, #tpu.memory_space<vmem>>, %arg3: memref<8x1xf32, #tpu.memory_space<vmem>>, %arg4: memref<8x1xf32, #tpu.memory_space<vmem>>, %arg5: memref<8x1xf32, #tpu.memory_space<vmem>>, %arg6: memref<338x800xbf16, #tpu.memory_space<vmem>>, %arg7: memref<16x128xbf16, #tpu.memory_space<vmem>>, %arg8: memref<16x1xf32, #tpu.memory_space<vmem>>, %arg9: memref<16x1xf32, #tpu.memory_space<vmem>>, %arg10: memref<16x1xf32, #tpu.memory_space<vmem>>, %arg11: memref<16x50xf32, #tpu.memory_space<vmem>>, %arg12: memref<1x1xf32, #tpu.memory_space<vmem>>, %arg13: memref<1x2xf32, #tpu.memory_space<vmem>>, %arg14: memref<128x50xf32, #tpu.memory_space<vmem>>) attributes {dimension_semantics = [#tpu.dimension_semantics<arbitrary>], iteration_bounds = array<i64: 1>, scalar_prefetch = 0 : i64, scratch_operands = 1 : i64, tpu.core_type = #tpu.core_type<tc>, window_params = [{pipeline_mode = #tpu.pipeline_mode<synchronous>, transform_indices = @transform_0, window_bounds = array<i64: 16, 338>}, {pipeline_mode = #tpu.pipeline_mode<synchronous>, transform_indices = @transform_1, window_bounds = array<i64: 8, 16>}, {pipeline_mode = #tpu.pipeline_mode<synchronous>, transform_indices = @transform_2, window_bounds = array<i64: 8, 1>}, {pipeline_mode = #tpu.pipeline_mode<synchronous>, transform_indices = @transform_3, window_bounds = array<i64: 8, 1>}, {pipeline_mode = #tpu.pipeline_mode<synchronous>, transform_indices = @transform_4, window_bounds = array<i64: 8, 1>}, {pipeline_mode = #tpu.pipeline_mode<synchronous>, transform_indices = @transform_5, window_bounds = array<i64: 338, 800>}, {pipeline_mode = #tpu.pipeline_mode<synchronous>, transform_indices = @transform_6, window_bounds = array<i64: 16, 128>}, {pipeline_mode = #tpu.pipeline_mode<synchronous>, transform_indices = @transform_7, window_bounds = array<i64: 16, 1>}, {pipeline_mode = #tpu.pipeline_mode<synchronous>, transform_indices = @transform_8, window_bounds = array<i64: 16, 1>}, {pipeline_mode = #tpu.pipeline_mode<synchronous>, transform_indices = @transform_9, window_bounds = array<i64: 16, 1>}, {pipeline_mode = #tpu.pipeline_mode<synchronous>, transform_indices = @transform_10, window_bounds = array<i64: 16, 50>}, {pipeline_mode = #tpu.pipeline_mode<synchronous>, transform_indices = @transform_11, window_bounds = array<i64: 1, 1>}, {pipeline_mode = #tpu.pipeline_mode<synchronous>, transform_indices = @transform_12, window_bounds = array<i64: 1, 2>}]} {
    %c0 = arith.constant 0 : index
    %c0_0 = arith.constant 0 : index
    %0 = vector.load %arg2[%c0, %c0_0] : memref<8x16xbf16, #tpu.memory_space<vmem>>, vector<8x16xbf16>
    %c0_1 = arith.constant 0 : index
    %c0_2 = arith.constant 0 : index
    %1 = vector.load %arg1[%c0_1, %c0_2] : memref<16x338xbf16, #tpu.memory_space<vmem>>, vector<16x338xbf16>
    %cst = arith.constant dense<0.000000e+00> : vector<8x338xf32>
    %2 = tpu.matmul %0, %1, %cst {dimension_numbers = #tpu.dot_dimension_numbers<[1], [0], [0], [1], [0, 0, 1, 1], [], []>} : vector<8x16xbf16>, vector<16x338xbf16>, vector<8x338xf32> -> vector<8x338xf32>
    %c0_3 = arith.constant 0 : index
    %c0_4 = arith.constant 0 : index
    %3 = vector.load %arg3[%c0_3, %c0_4] : memref<8x1xf32, #tpu.memory_space<vmem>>, vector<8x1xf32>
    %4 = vector.broadcast %3 : vector<8x1xf32> to vector<8x338xf32>
    %5 = arith.addf %2, %4 : vector<8x338xf32>
    %c0_5 = arith.constant 0 : index
    %c0_6 = arith.constant 0 : index
    %6 = vector.load %arg4[%c0_5, %c0_6] : memref<8x1xf32, #tpu.memory_space<vmem>>, vector<8x1xf32>
    %c0_7 = arith.constant 0 : index
    %c0_8 = arith.constant 0 : index
    %7 = vector.load %arg5[%c0_7, %c0_8] : memref<8x1xf32, #tpu.memory_space<vmem>>, vector<8x1xf32>
    %cst_9 = arith.constant dense<0.000000e+00> : vector<8xf32>
    %8 = vector.multi_reduction <add>, %5, %cst_9 [1] : vector<8x338xf32> to vector<8xf32>
    %9 = vector.shape_cast %8 : vector<8xf32> to vector<8x1xf32>
    %cst_10 = arith.constant 2.958580e-03 : f32
    %10 = vector.broadcast %cst_10 : f32 to vector<8x1xf32>
    %11 = arith.mulf %9, %10 : vector<8x1xf32>
    %12 = vector.broadcast %11 : vector<8x1xf32> to vector<8x338xf32>
    %13 = arith.subf %5, %12 : vector<8x338xf32>
    %14 = arith.mulf %13, %13 : vector<8x338xf32>
    %cst_11 = arith.constant dense<0.000000e+00> : vector<8xf32>
    %15 = vector.multi_reduction <add>, %14, %cst_11 [1] : vector<8x338xf32> to vector<8xf32>
    %16 = vector.shape_cast %15 : vector<8xf32> to vector<8x1xf32>
    %cst_12 = arith.constant 2.958580e-03 : f32
    %17 = vector.broadcast %cst_12 : f32 to vector<8x1xf32>
    %18 = arith.mulf %16, %17 : vector<8x1xf32>
    %cst_13 = arith.constant 9.99999974E-6 : f32
    %19 = vector.broadcast %cst_13 : f32 to vector<8x1xf32>
    %20 = arith.addf %18, %19 : vector<8x1xf32>
    %21 = math.rsqrt %20 : vector<8x1xf32>
    %22 = arith.mulf %6, %21 : vector<8x1xf32>
    %23 = vector.broadcast %22 : vector<8x1xf32> to vector<8x338xf32>
    %24 = arith.mulf %23, %13 : vector<8x338xf32>
    %25 = vector.broadcast %7 : vector<8x1xf32> to vector<8x338xf32>
    %26 = arith.addf %24, %25 : vector<8x338xf32>
    %cst_14 = arith.constant 2.000000e-01 : f32
    %27 = vector.broadcast %cst_14 : f32 to vector<8x338xf32>
    %28 = arith.mulf %27, %26 : vector<8x338xf32>
    %29 = arith.maximumf %26, %28 : vector<8x338xf32>
    %30 = arith.truncf %29 : vector<8x338xf32> to vector<8x338xbf16>
    %c0_15 = arith.constant 0 : index
    %c0_16 = arith.constant 0 : index
    %31 = vector.load %arg6[%c0_15, %c0_16] : memref<338x800xbf16, #tpu.memory_space<vmem>>, vector<338x800xbf16>
    %cst_17 = arith.constant dense<0.000000e+00> : vector<8x800xf32>
    %32 = tpu.matmul %30, %31, %cst_17 {dimension_numbers = #tpu.dot_dimension_numbers<[1], [0], [0], [1], [0, 0, 1, 1], [], []>} : vector<8x338xbf16>, vector<338x800xbf16>, vector<8x800xf32> -> vector<8x800xf32>
    %33 = vector.extract_strided_slice %32 {offsets = [0, 0], sizes = [8, 50], strides = [1, 1]} : vector<8x800xf32> to vector<8x50xf32>
    %c0_18 = arith.constant 0 : index
    %c0_19 = arith.constant 0 : index
    %34 = vector.load %arg14[%c0_18, %c0_19] : memref<128x50xf32, #tpu.memory_space<vmem>>, vector<8x50xf32>
    tpu.vector_store %arg14[%c0_18, %c0_19], %33 {strides = array<i32>} : memref<128x50xf32, #tpu.memory_space<vmem>>, vector<8x50xf32>,
    %35 = vector.extract_strided_slice %32 {offsets = [0, 50], sizes = [8, 50], strides = [1, 1]} : vector<8x800xf32> to vector<8x50xf32>
    %c8 = arith.constant 8 : index
    %c0_20 = arith.constant 0 : index
    %36 = vector.load %arg14[%c8, %c0_20] : memref<128x50xf32, #tpu.memory_space<vmem>>, vector<8x50xf32>
    tpu.vector_store %arg14[%c8, %c0_20], %35 {strides = array<i32>} : memref<128x50xf32, #tpu.memory_space<vmem>>, vector<8x50xf32>,
    %37 = vector.extract_strided_slice %32 {offsets = [0, 100], sizes = [8, 50], strides = [1, 1]} : vector<8x800xf32> to vector<8x50xf32>
    %c16 = arith.constant 16 : index
    %c0_21 = arith.constant 0 : index
    %38 = vector.load %arg14[%c16, %c0_21] : memref<128x50xf32, #tpu.memory_space<vmem>>, vector<8x50xf32>
    tpu.vector_store %arg14[%c16, %c0_21], %37 {strides = array<i32>} : memref<128x50xf32, #tpu.memory_space<vmem>>, vector<8x50xf32>,
    %39 = vector.extract_strided_slice %32 {offsets = [0, 150], sizes = [8, 50], strides = [1, 1]} : vector<8x800xf32> to vector<8x50xf32>
    %c24 = arith.constant 24 : index
    %c0_22 = arith.constant 0 : index
    %40 = vector.load %arg14[%c24, %c0_22] : memref<128x50xf32, #tpu.memory_space<vmem>>, vector<8x50xf32>
    tpu.vector_store %arg14[%c24, %c0_22], %39 {strides = array<i32>} : memref<128x50xf32, #tpu.memory_space<vmem>>, vector<8x50xf32>,
    %41 = vector.extract_strided_slice %32 {offsets = [0, 200], sizes = [8, 50], strides = [1, 1]} : vector<8x800xf32> to vector<8x50xf32>
    %c32 = arith.constant 32 : index
    %c0_23 = arith.constant 0 : index
    %42 = vector.load %arg14[%c32, %c0_23] : memref<128x50xf32, #tpu.memory_space<vmem>>, vector<8x50xf32>
    tpu.vector_store %arg14[%c32, %c0_23], %41 {strides = array<i32>} : memref<128x50xf32, #tpu.memory_space<vmem>>, vector<8x50xf32>,
    %43 = vector.extract_strided_slice %32 {offsets = [0, 250], sizes = [8, 50], strides = [1, 1]} : vector<8x800xf32> to vector<8x50xf32>
    %c40 = arith.constant 40 : index
    %c0_24 = arith.constant 0 : index
    %44 = vector.load %arg14[%c40, %c0_24] : memref<128x50xf32, #tpu.memory_space<vmem>>, vector<8x50xf32>
    tpu.vector_store %arg14[%c40, %c0_24], %43 {strides = array<i32>} : memref<128x50xf32, #tpu.memory_space<vmem>>, vector<8x50xf32>,
    %45 = vector.extract_strided_slice %32 {offsets = [0, 300], sizes = [8, 50], strides = [1, 1]} : vector<8x800xf32> to vector<8x50xf32>
    %c48 = arith.constant 48 : index
    %c0_25 = arith.constant 0 : index
    %46 = vector.load %arg14[%c48, %c0_25] : memref<128x50xf32, #tpu.memory_space<vmem>>, vector<8x50xf32>
    tpu.vector_store %arg14[%c48, %c0_25], %45 {strides = array<i32>} : memref<128x50xf32, #tpu.memory_space<vmem>>, vector<8x50xf32>,
    %47 = vector.extract_strided_slice %32 {offsets = [0, 350], sizes = [8, 50], strides = [1, 1]} : vector<8x800xf32> to vector<8x50xf32>
    %c56 = arith.constant 56 : index
    %c0_26 = arith.constant 0 : index
    %48 = vector.load %arg14[%c56, %c0_26] : memref<128x50xf32, #tpu.memory_space<vmem>>, vector<8x50xf32>
    tpu.vector_store %arg14[%c56, %c0_26], %47 {strides = array<i32>} : memref<128x50xf32, #tpu.memory_space<vmem>>, vector<8x50xf32>,
    %49 = vector.extract_strided_slice %32 {offsets = [0, 400], sizes = [8, 50], strides = [1, 1]} : vector<8x800xf32> to vector<8x50xf32>
    %c64 = arith.constant 64 : index
    %c0_27 = arith.constant 0 : index
    %50 = vector.load %arg14[%c64, %c0_27] : memref<128x50xf32, #tpu.memory_space<vmem>>, vector<8x50xf32>
    tpu.vector_store %arg14[%c64, %c0_27], %49 {strides = array<i32>} : memref<128x50xf32, #tpu.memory_space<vmem>>, vector<8x50xf32>,
    %51 = vector.extract_strided_slice %32 {offsets = [0, 450], sizes = [8, 50], strides = [1, 1]} : vector<8x800xf32> to vector<8x50xf32>
    %c72 = arith.constant 72 : index
    %c0_28 = arith.constant 0 : index
    %52 = vector.load %arg14[%c72, %c0_28] : memref<128x50xf32, #tpu.memory_space<vmem>>, vector<8x50xf32>
    tpu.vector_store %arg14[%c72, %c0_28], %51 {strides = array<i32>} : memref<128x50xf32, #tpu.memory_space<vmem>>, vector<8x50xf32>,
    %53 = vector.extract_strided_slice %32 {offsets = [0, 500], sizes = [8, 50], strides = [1, 1]} : vector<8x800xf32> to vector<8x50xf32>
    %c80 = arith.constant 80 : index
    %c0_29 = arith.constant 0 : index
    %54 = vector.load %arg14[%c80, %c0_29] : memref<128x50xf32, #tpu.memory_space<vmem>>, vector<8x50xf32>
    tpu.vector_store %arg14[%c80, %c0_29], %53 {strides = array<i32>} : memref<128x50xf32, #tpu.memory_space<vmem>>, vector<8x50xf32>,
    %55 = vector.extract_strided_slice %32 {offsets = [0, 550], sizes = [8, 50], strides = [1, 1]} : vector<8x800xf32> to vector<8x50xf32>
    %c88 = arith.constant 88 : index
    %c0_30 = arith.constant 0 : index
    %56 = vector.load %arg14[%c88, %c0_30] : memref<128x50xf32, #tpu.memory_space<vmem>>, vector<8x50xf32>
    tpu.vector_store %arg14[%c88, %c0_30], %55 {strides = array<i32>} : memref<128x50xf32, #tpu.memory_space<vmem>>, vector<8x50xf32>,
    %57 = vector.extract_strided_slice %32 {offsets = [0, 600], sizes = [8, 50], strides = [1, 1]} : vector<8x800xf32> to vector<8x50xf32>
    %c96 = arith.constant 96 : index
    %c0_31 = arith.constant 0 : index
    %58 = vector.load %arg14[%c96, %c0_31] : memref<128x50xf32, #tpu.memory_space<vmem>>, vector<8x50xf32>
    tpu.vector_store %arg14[%c96, %c0_31], %57 {strides = array<i32>} : memref<128x50xf32, #tpu.memory_space<vmem>>, vector<8x50xf32>,
    %59 = vector.extract_strided_slice %32 {offsets = [0, 650], sizes = [8, 50], strides = [1, 1]} : vector<8x800xf32> to vector<8x50xf32>
    %c104 = arith.constant 104 : index
    %c0_32 = arith.constant 0 : index
    %60 = vector.load %arg14[%c104, %c0_32] : memref<128x50xf32, #tpu.memory_space<vmem>>, vector<8x50xf32>
    tpu.vector_store %arg14[%c104, %c0_32], %59 {strides = array<i32>} : memref<128x50xf32, #tpu.memory_space<vmem>>, vector<8x50xf32>,
    %61 = vector.extract_strided_slice %32 {offsets = [0, 700], sizes = [8, 50], strides = [1, 1]} : vector<8x800xf32> to vector<8x50xf32>
    %c112 = arith.constant 112 : index
    %c0_33 = arith.constant 0 : index
    %62 = vector.load %arg14[%c112, %c0_33] : memref<128x50xf32, #tpu.memory_space<vmem>>, vector<8x50xf32>
    tpu.vector_store %arg14[%c112, %c0_33], %61 {strides = array<i32>} : memref<128x50xf32, #tpu.memory_space<vmem>>, vector<8x50xf32>,
    %63 = vector.extract_strided_slice %32 {offsets = [0, 750], sizes = [8, 50], strides = [1, 1]} : vector<8x800xf32> to vector<8x50xf32>
    %c120 = arith.constant 120 : index
    %c0_34 = arith.constant 0 : index
    %64 = vector.load %arg14[%c120, %c0_34] : memref<128x50xf32, #tpu.memory_space<vmem>>, vector<8x50xf32>
    tpu.vector_store %arg14[%c120, %c0_34], %63 {strides = array<i32>} : memref<128x50xf32, #tpu.memory_space<vmem>>, vector<8x50xf32>,
    %c0_35 = arith.constant 0 : index
    %c0_36 = arith.constant 0 : index
    %65 = vector.load %arg14[%c0_35, %c0_36] : memref<128x50xf32, #tpu.memory_space<vmem>>, vector<128x50xf32>
    %66 = arith.truncf %65 : vector<128x50xf32> to vector<128x50xbf16>
    %c0_37 = arith.constant 0 : index
    %c0_38 = arith.constant 0 : index
    %67 = vector.load %arg7[%c0_37, %c0_38] : memref<16x128xbf16, #tpu.memory_space<vmem>>, vector<16x128xbf16>
    %cst_39 = arith.constant dense<0.000000e+00> : vector<16x50xf32>
    %68 = tpu.matmul %67, %66, %cst_39 {dimension_numbers = #tpu.dot_dimension_numbers<[1], [0], [0], [1], [0, 0, 1, 1], [], []>} : vector<16x128xbf16>, vector<128x50xbf16>, vector<16x50xf32> -> vector<16x50xf32>
    %c0_40 = arith.constant 0 : index
    %c0_41 = arith.constant 0 : index
    %69 = vector.load %arg8[%c0_40, %c0_41] : memref<16x1xf32, #tpu.memory_space<vmem>>, vector<16x1xf32>
    %70 = vector.broadcast %69 : vector<16x1xf32> to vector<16x50xf32>
    %71 = arith.addf %68, %70 : vector<16x50xf32>
    %c0_42 = arith.constant 0 : index
    %c0_43 = arith.constant 0 : index
    %72 = vector.load %arg9[%c0_42, %c0_43] : memref<16x1xf32, #tpu.memory_space<vmem>>, vector<16x1xf32>
    %c0_44 = arith.constant 0 : index
    %c0_45 = arith.constant 0 : index
    %73 = vector.load %arg10[%c0_44, %c0_45] : memref<16x1xf32, #tpu.memory_space<vmem>>, vector<16x1xf32>
    %cst_46 = arith.constant dense<0.000000e+00> : vector<16xf32>
    %74 = vector.multi_reduction <add>, %71, %cst_46 [1] : vector<16x50xf32> to vector<16xf32>
    %75 = vector.shape_cast %74 : vector<16xf32> to vector<16x1xf32>
    %cst_47 = arith.constant 2.000000e-02 : f32
    %76 = vector.broadcast %cst_47 : f32 to vector<16x1xf32>
    %77 = arith.mulf %75, %76 : vector<16x1xf32>
    %78 = vector.broadcast %77 : vector<16x1xf32> to vector<16x50xf32>
    %79 = arith.subf %71, %78 : vector<16x50xf32>
    %80 = arith.mulf %79, %79 : vector<16x50xf32>
    %cst_48 = arith.constant dense<0.000000e+00> : vector<16xf32>
    %81 = vector.multi_reduction <add>, %80, %cst_48 [1] : vector<16x50xf32> to vector<16xf32>
    %82 = vector.shape_cast %81 : vector<16xf32> to vector<16x1xf32>
    %cst_49 = arith.constant 2.000000e-02 : f32
    %83 = vector.broadcast %cst_49 : f32 to vector<16x1xf32>
    %84 = arith.mulf %82, %83 : vector<16x1xf32>
    %cst_50 = arith.constant 9.99999974E-6 : f32
    %85 = vector.broadcast %cst_50 : f32 to vector<16x1xf32>
    %86 = arith.addf %84, %85 : vector<16x1xf32>
    %87 = math.rsqrt %86 : vector<16x1xf32>
    %88 = arith.mulf %72, %87 : vector<16x1xf32>
    %89 = vector.broadcast %88 : vector<16x1xf32> to vector<16x50xf32>
    %90 = arith.mulf %89, %79 : vector<16x50xf32>
    %91 = vector.broadcast %73 : vector<16x1xf32> to vector<16x50xf32>
    %92 = arith.addf %90, %91 : vector<16x50xf32>
    %cst_51 = arith.constant 2.000000e-01 : f32
    %93 = vector.broadcast %cst_51 : f32 to vector<16x50xf32>
    %94 = arith.mulf %93, %92 : vector<16x50xf32>
    %95 = arith.maximumf %92, %94 : vector<16x50xf32>
    %c0_52 = arith.constant 0 : index
    %c0_53 = arith.constant 0 : index
    %96 = vector.load %arg11[%c0_52, %c0_53] : memref<16x50xf32, #tpu.memory_space<vmem>>, vector<16x50xf32>
    %97 = arith.mulf %95, %96 : vector<16x50xf32>
    %98 = vector.extract_strided_slice %97 {offsets = [0, 0], sizes = [16, 25], strides = [1, 1]} : vector<16x50xf32> to vector<16x25xf32>
    %cst_54 = arith.constant dense<0.000000e+00> : vector<16xf32>
    %99 = vector.multi_reduction <add>, %98, %cst_54 [1] : vector<16x25xf32> to vector<16xf32>
    %100 = vector.shape_cast %99 : vector<16xf32> to vector<16x1xf32>
    %cst_55 = arith.constant dense<0.000000e+00> : vector<1xf32>
    %101 = vector.multi_reduction <add>, %100, %cst_55 [0] : vector<16x1xf32> to vector<1xf32>
    %102 = vector.shape_cast %101 : vector<1xf32> to vector<1x1xf32>
    %c0_56 = arith.constant 0 : index
    %c0_57 = arith.constant 0 : index
    %103 = vector.load %arg12[%c0_56, %c0_57] : memref<1x1xf32, #tpu.memory_space<vmem>>, vector<1x1xf32>
    %104 = arith.addf %102, %103 : vector<1x1xf32>
    %c0_58 = arith.constant 0 : index
    %c0_59 = arith.constant 0 : index
    %105 = vector.load %arg13[%c0_58, %c0_59] : memref<1x2xf32, #tpu.memory_space<vmem>>, vector<1x1xf32>
    tpu.vector_store %arg13[%c0_58, %c0_59], %104 {strides = array<i32>} : memref<1x2xf32, #tpu.memory_space<vmem>>, vector<1x1xf32>,
    %106 = vector.extract_strided_slice %97 {offsets = [0, 25], sizes = [16, 25], strides = [1, 1]} : vector<16x50xf32> to vector<16x25xf32>
    %cst_60 = arith.constant dense<0.000000e+00> : vector<16xf32>
    %107 = vector.multi_reduction <add>, %106, %cst_60 [1] : vector<16x25xf32> to vector<16xf32>
    %108 = vector.shape_cast %107 : vector<16xf32> to vector<16x1xf32>
    %cst_61 = arith.constant dense<0.000000e+00> : vector<1xf32>
    %109 = vector.multi_reduction <add>, %108, %cst_61 [0] : vector<16x1xf32> to vector<1xf32>
    %110 = vector.shape_cast %109 : vector<1xf32> to vector<1x1xf32>
    %c0_62 = arith.constant 0 : index
    %c0_63 = arith.constant 0 : index
    %111 = vector.load %arg12[%c0_62, %c0_63] : memref<1x1xf32, #tpu.memory_space<vmem>>, vector<1x1xf32>
    %112 = arith.addf %110, %111 : vector<1x1xf32>
    %c0_64 = arith.constant 0 : index
    %c1 = arith.constant 1 : index
    %113 = vector.load %arg13[%c0_64, %c1] : memref<1x2xf32, #tpu.memory_space<vmem>>, vector<1x1xf32>
    tpu.vector_store %arg13[%c0_64, %c1], %112 {strides = array<i32>} : memref<1x2xf32, #tpu.memory_space<vmem>>, vector<1x1xf32>,
    return
  }
  func.func @transform_0(%arg0: i32) -> (i32, i32) {
    %c0_i32 = arith.constant 0 : i32
    %c0_i32_0 = arith.constant 0 : i32
    %c0_i32_1 = arith.constant 0 : i32
    return %c0_i32, %c0_i32_0 : i32, i32
  }
  func.func @transform_1(%arg0: i32) -> (i32, i32) {
    %c0_i32 = arith.constant 0 : i32
    %c0_i32_0 = arith.constant 0 : i32
    %c0_i32_1 = arith.constant 0 : i32
    return %c0_i32, %c0_i32_0 : i32, i32
  }
  func.func @transform_2(%arg0: i32) -> (i32, i32) {
    %c0_i32 = arith.constant 0 : i32
    %c0_i32_0 = arith.constant 0 : i32
    %c0_i32_1 = arith.constant 0 : i32
    return %c0_i32, %c0_i32_0 : i32, i32
  }
  func.func @transform_3(%arg0: i32) -> (i32, i32) {
    %c0_i32 = arith.constant 0 : i32
    %c0_i32_0 = arith.constant 0 : i32
    %c0_i32_1 = arith.constant 0 : i32
    return %c0_i32, %c0_i32_0 : i32, i32
  }
  func.func @transform_4(%arg0: i32) -> (i32, i32) {
    %c0_i32 = arith.constant 0 : i32
    %c0_i32_0 = arith.constant 0 : i32
    %c0_i32_1 = arith.constant 0 : i32
    return %c0_i32, %c0_i32_0 : i32, i32
  }
  func.func @transform_5(%arg0: i32) -> (i32, i32) {
    %c0_i32 = arith.constant 0 : i32
    %c0_i32_0 = arith.constant 0 : i32
    %c0_i32_1 = arith.constant 0 : i32
    return %c0_i32, %c0_i32_0 : i32, i32
  }
  func.func @transform_6(%arg0: i32) -> (i32, i32) {
    %c0_i32 = arith.constant 0 : i32
    %c0_i32_0 = arith.constant 0 : i32
    %c0_i32_1 = arith.constant 0 : i32
    return %c0_i32, %c0_i32_0 : i32, i32
  }
  func.func @transform_7(%arg0: i32) -> (i32, i32) {
    %c0_i32 = arith.constant 0 : i32
    %c0_i32_0 = arith.constant 0 : i32
    %c0_i32_1 = arith.constant 0 : i32
    return %c0_i32, %c0_i32_0 : i32, i32
  }
  func.func @transform_8(%arg0: i32) -> (i32, i32) {
    %c0_i32 = arith.constant 0 : i32
    %c0_i32_0 = arith.constant 0 : i32
    %c0_i32_1 = arith.constant 0 : i32
    return %c0_i32, %c0_i32_0 : i32, i32
  }
  func.func @transform_9(%arg0: i32) -> (i32, i32) {
    %c0_i32 = arith.constant 0 : i32
    %c0_i32_0 = arith.constant 0 : i32
    %c0_i32_1 = arith.constant 0 : i32
    return %c0_i32, %c0_i32_0 : i32, i32
  }
  func.func @transform_10(%arg0: i32) -> (i32, i32) {
    %c0_i32 = arith.constant 0 : i32
    %c0_i32_0 = arith.constant 0 : i32
    %c0_i32_1 = arith.constant 0 : i32
    return %c0_i32, %c0_i32_0 : i32, i32
  }
  func.func @transform_11(%arg0: i32) -> (i32, i32) {
    %c0_i32 = arith.constant 0 : i32
    %c0_i32_0 = arith.constant 0 : i32
    %c0_i32_1 = arith.constant 0 : i32
    return %c0_i32, %c0_i32_0 : i32, i32
  }
  func.func @transform_12(%arg0: i32) -> (i32, i32) {
    %c0_i32 = arith.constant 0 : i32
    %c0_i32_0 = arith.constant 0 : i32
    %c0_i32_1 = arith.constant 0 : i32
    return %c0_i32, %c0_i32_0 : i32, i32
  }
}

</mosaic_0001>

<llo_original>
// kernel: tpu_custom_call.1
$region0: #{tpu_custom_call.1}
  #allocation0 [shape = 'u32[]', space=smem, size = 0x4, offset = 0x4, fixed_abs, tag = 'smem constant byte address 0x4 - core index']
  #allocation1 [shape = 'u32[144,128]{1,0:T(1,128)}', space=vmem, size = 0x12000, scoped, tag = 'internal scratch']
  #allocation2 [shape = 'f32[128,50]{1,0:T(8,128)}', space=vmem, size = 0x10000, scoped, tag = 'scratch operand']
  #allocation3 [shape = 'f32[1,1]{1,0:T(1,128)S(1)}', space=vmem, size = 0x200, scoped, tag = 'scoped memory for tpu_custom_call.1']
  %s0 = inlined_call_operand.vmem [shape: bf16[16,338], index: 0, kind: input, shape index: {}]
  %s1 = inlined_call_operand.vmem [shape: bf16[8,16], index: 1, kind: input, shape index: {}]
  %s2 = inlined_call_operand.vmem [shape: f32[8,1], index: 2, kind: input, shape index: {}]
  %s3 = inlined_call_operand.vmem [shape: f32[8,1], index: 3, kind: input, shape index: {}]
  %s4 = inlined_call_operand.vmem [shape: f32[8,1], index: 4, kind: input, shape index: {}]
  %s5 = inlined_call_operand.vmem [shape: bf16[338,800], index: 5, kind: input, shape index: {}]
  %s6 = inlined_call_operand.vmem [shape: bf16[16,128], index: 6, kind: input, shape index: {}]
  %s7 = inlined_call_operand.vmem [shape: f32[16,1], index: 7, kind: input, shape index: {}]
  %s8 = inlined_call_operand.vmem [shape: f32[16,1], index: 8, kind: input, shape index: {}]
  %s9 = inlined_call_operand.vmem [shape: f32[16,1], index: 9, kind: input, shape index: {}]
  %s10 = inlined_call_operand.vmem [shape: f32[16,50], index: 10, kind: input, shape index: {}]
  %s11 = inlined_call_operand.<no memory space> [shape: f32[1,1], index: 11, kind: input, shape index: {}]
  %s12 = inlined_call_operand.hbm [shape: f32[1,2], index: 12, kind: output, shape index: {}]
  %s13 = sld [smem:[#allocation0]]
  $region58: #{tpu_custom_call.1} parent=0
    _
  %s15 = ssub.s32 1, %s13
  %s16 = scalar_select 0, %s15, %s13
  %v17 = vstv %s11
  %18 = vst [vmem:[#allocation3] sm:$0x1] %v17
  $region1: #{tpu_custom_call.1} parent=0
    #allocation4 [shape = 'u8[512]{0}', space=vmem, size = 0x400, scoped, tag = 'output window, operand 0, single buffered']
    #allocation5 [shape = 's32[1]{0}', space=sflag, size = 0x4, scoped, tag = 'scoped memory for tpu_custom_call.1']
    %19 = vsyncpa [#allocation5], 0
    // Predicated region
    $region2: #{tpu_custom_call.1} parent=1 // pred_check
      _
    $region3: #{tpu_custom_call.1} parent=1 // pred_check_branch
      %21 = sbr.rel (0) target = $region5
    $region4: #{tpu_custom_call.1} parent=1 // pred_region
      _
    $region5: #{tpu_custom_call.1} parent=1 // pred_fallthru
      _
    // Predicated region
    $region6: #{tpu_custom_call.1} parent=1 // pred_check
      _
    $region7: #{tpu_custom_call.1} parent=1 // pred_check_branch
      %23 = sbr.rel (0) target = $region9
    $region8: #{tpu_custom_call.1} parent=1 // pred_region
      _
    $region9: #{tpu_custom_call.1} parent=1 // pred_fallthru
      _
    // Predicated region
    $region10: #{tpu_custom_call.1} parent=1 // pred_check
      _
    $region11: #{tpu_custom_call.1} parent=1 // pred_check_branch
      %25 = sbr.rel (0) target = $region13
    $region12: #{tpu_custom_call.1} parent=1 // pred_region
      _
    $region13: #{tpu_custom_call.1} parent=1 // pred_fallthru
      _
    // Predicated region
    $region14: #{tpu_custom_call.1} parent=1 // pred_check
      _
    $region15: #{tpu_custom_call.1} parent=1 // pred_check_branch
      %27 = sbr.rel (0) target = $region17
    $region16: #{tpu_custom_call.1} parent=1 // pred_region
      _
    $region17: #{tpu_custom_call.1} parent=1 // pred_fallthru
      _
    // Predicated region
    $region18: #{tpu_custom_call.1} parent=1 // pred_check
      _
    $region19: #{tpu_custom_call.1} parent=1 // pred_check_branch
      %29 = sbr.rel (0) target = $region21
    $region20: #{tpu_custom_call.1} parent=1 // pred_region
      _
    $region21: #{tpu_custom_call.1} parent=1 // pred_fallthru
      _
    // Predicated region
    $region22: #{tpu_custom_call.1} parent=1 // pred_check
      _
    $region23: #{tpu_custom_call.1} parent=1 // pred_check_branch
      %31 = sbr.rel (0) target = $region25
    $region24: #{tpu_custom_call.1} parent=1 // pred_region
      _
    $region25: #{tpu_custom_call.1} parent=1 // pred_fallthru
      _
    // Predicated region
    $region26: #{tpu_custom_call.1} parent=1 // pred_check
      _
    $region27: #{tpu_custom_call.1} parent=1 // pred_check_branch
      %33 = sbr.rel (0) target = $region29
    $region28: #{tpu_custom_call.1} parent=1 // pred_region
      _
    $region29: #{tpu_custom_call.1} parent=1 // pred_fallthru
      _
    // Predicated region
    $region30: #{tpu_custom_call.1} parent=1 // pred_check
      _
    $region31: #{tpu_custom_call.1} parent=1 // pred_check_branch
      %35 = sbr.rel (0) target = $region33
    $region32: #{tpu_custom_call.1} parent=1 // pred_region
      _
    $region33: #{tpu_custom_call.1} parent=1 // pred_fallthru
      _
    // Predicated region
    $region34: #{tpu_custom_call.1} parent=1 // pred_check
      _
    $region35: #{tpu_custom_call.1} parent=1 // pred_check_branch
      %37 = sbr.rel (0) target = $region37
    $region36: #{tpu_custom_call.1} parent=1 // pred_region
      _
    $region37: #{tpu_custom_call.1} parent=1 // pred_fallthru
      _
    // Predicated region
    $region38: #{tpu_custom_call.1} parent=1 // pred_check
      _
    $region39: #{tpu_custom_call.1} parent=1 // pred_check_branch
      %39 = sbr.rel (0) target = $region41
    $region40: #{tpu_custom_call.1} parent=1 // pred_region
      _
    $region41: #{tpu_custom_call.1} parent=1 // pred_fallthru
      _
    // Predicated region
    $region42: #{tpu_custom_call.1} parent=1 // pred_check
      _
    $region43: #{tpu_custom_call.1} parent=1 // pred_check_branch
      %41 = sbr.rel (0) target = $region45
    $region44: #{tpu_custom_call.1} parent=1 // pred_region
      _
    $region45: #{tpu_custom_call.1} parent=1 // pred_fallthru
      _
    // Predicated region
    $region46: #{tpu_custom_call.1} parent=1 // pred_check
      _
    $region47: #{tpu_custom_call.1} parent=1 // pred_check_branch
      %43 = sbr.rel (0) target = $region49
    $region48: #{tpu_custom_call.1} parent=1 // pred_region
      _
    $region49: #{tpu_custom_call.1} parent=1 // pred_fallthru
      _
    %v45 = vld [vmem:[%s1] sm:$0xf]
    %v46 = vld [vmem:[%s0] sm:$0xff]
    %v47 = vld [vmem:[%s0 + $0x8] sm:$0xf]
    %v48 = vld [vmem:[%s0 + $0xc] sm:$0xff]
    %v49 = vld [vmem:[%s0 + $0x14] sm:$0xf]
    %v50 = vld [vmem:[%s2] sm:$0xff]
    %52 = vset.pattern.permute.xlu0 0
    %53 = vperm.xlu0 %52, %v50
    %v54 = vpop.permute.xlu0 %53
    %v60 = vunpack.c.l.b16 %v46
    %v61 = vunpack.c.h.b16 %v46
    %v62 = vunpack.c.l.b16 %v47
    %v63 = vunpack.c.l.b16 %v48
    %v64 = vunpack.c.h.b16 %v48
    %v65 = vunpack.c.l.b16 %v49
    %v66 = vpack.c.b16 %v63, %v60
    %v67 = vpack.c.b16 %v64, %v61
    %v68 = vpack.c.b16 %v65, %v62
    %vm72 = vcmask 130048
    %v74 = vsel %vm72, %v45, 0
    %76 = vmatprep.subr.bf16.mxu0 %v67
    %77 = vmatpush1.bf16.msra.mxu0 %v66
    %78 = vmatprep.subr.bf16.mxu0 0
    %79 = vmatpush1.bf16.msra.mxu0 0
    %80 = vmatprep.subr.bf16.mxu0 0
    %81 = vmatpush1.bf16.msra.mxu0 0
    %82 = vmatprep.subr.bf16.mxu0 0
    %83 = vmatpush1.bf16.msra.mxu0 0
    %84 = vmatprep.subr.bf16.mxu0 0
    %85 = vmatpush1.bf16.msra.mxu0 0
    %86 = vmatprep.subr.bf16.mxu0 0
    %87 = vmatpush1.bf16.msra.mxu0 0
    %88 = vmatprep.subr.bf16.mxu0 0
    %89 = vmatpush1.bf16.msra.mxu0 0
    %90 = vmatprep.subr.bf16.mxu0 0
    %91 = vmatpush1.bf16.msra.mxu0 0
    %92 = vmatprep.subr.bf16.mxu0 0
    %93 = vmatpush1.bf16.msra.mxu0 0
    %94 = vmatprep.subr.bf16.mxu0 0
    %95 = vmatpush1.bf16.msra.mxu0 0
    %96 = vmatprep.subr.bf16.mxu0 0
    %97 = vmatpush1.bf16.msra.mxu0 0
    %98 = vmatprep.subr.bf16.mxu0 0
    %99 = vmatpush1.bf16.msra.mxu0 0
    %100 = vmatprep.subr.bf16.mxu0 0
    %101 = vmatpush1.bf16.msra.mxu0 0
    %102 = vmatprep.subr.bf16.mxu0 0
    %103 = vmatpush1.bf16.msra.mxu0 0
    %104 = vmatprep.subr.bf16.mxu0 0
    %105 = vmatpush1.bf16.msra.mxu0 0
    %106 = vmatprep.subr.bf16.mxu0 0
    %107 = vmatpush1.bf16.msra.mxu0 0
    %108 = vmatprep.mubr.bf16.mxu0 0
    %109 = vmatmul.mubr.bf16.gmra.mrb[0].mxu0 %v74
    %v110 = vpop.f32.mrb[0].mxu0
    %v111 = vadd.f32 %v54, %v110
    %v112 = vpop.f32.mrb[0].mxu0
    %v113 = vadd.f32 %v54, %v112
    %v114 = vpop.f32.mrb[0].mxu0
    %v115 = vpop.f32.mrb[0].mxu0
    %116 = vdwg.mxu0
    %117 = vmatprep.subr.bf16.mxu0 0
    %118 = vmatpush1.bf16.msra.mxu0 %v68
    %119 = vmatprep.subr.bf16.mxu0 0
    %120 = vmatpush1.bf16.msra.mxu0 0
    %121 = vmatprep.subr.bf16.mxu0 0
    %122 = vmatpush1.bf16.msra.mxu0 0
    %123 = vmatprep.subr.bf16.mxu0 0
    %124 = vmatpush1.bf16.msra.mxu0 0
    %125 = vmatprep.subr.bf16.mxu0 0
    %126 = vmatpush1.bf16.msra.mxu0 0
    %127 = vmatprep.subr.bf16.mxu0 0
    %128 = vmatpush1.bf16.msra.mxu0 0
    %129 = vmatprep.subr.bf16.mxu0 0
    %130 = vmatpush1.bf16.msra.mxu0 0
    %131 = vmatprep.subr.bf16.mxu0 0
    %132 = vmatpush1.bf16.msra.mxu0 0
    %133 = vmatprep.subr.bf16.mxu0 0
    %134 = vmatpush1.bf16.msra.mxu0 0
    %135 = vmatprep.subr.bf16.mxu0 0
    %136 = vmatpush1.bf16.msra.mxu0 0
    %137 = vmatprep.subr.bf16.mxu0 0
    %138 = vmatpush1.bf16.msra.mxu0 0
    %139 = vmatprep.subr.bf16.mxu0 0
    %140 = vmatpush1.bf16.msra.mxu0 0
    %141 = vmatprep.subr.bf16.mxu0 0
    %142 = vmatpush1.bf16.msra.mxu0 0
    %143 = vmatprep.subr.bf16.mxu0 0
    %144 = vmatpush1.bf16.msra.mxu0 0
    %145 = vmatprep.subr.bf16.mxu0 0
    %146 = vmatpush1.bf16.msra.mxu0 0
    %147 = vmatprep.subr.bf16.mxu0 0
    %148 = vmatpush1.bf16.msra.mxu0 0
    %149 = vmatprep.mubr.bf16.mxu0 0
    %150 = vmatmul.mubr.bf16.gmra.mrb[0].mxu0 %v74
    %v151 = vpop.f32.mrb[0].mxu0
    %v152 = vadd.f32 %v54, %v151
    %v153 = vpop.f32.mrb[0].mxu0
    %v154 = vpop.f32.mrb[0].mxu0
    %v155 = vpop.f32.mrb[0].mxu0
    %156 = vdwg.mxu0
    %v157 = vld [vmem:[%s3] sm:$0xff]
    %v158 = vld [vmem:[%s4] sm:$0xff]
    %v159 = vadd.f32 %v111, %v113
    %vm160 = vcmask 670720
    %v161 = vsel %vm160, %v152, 0.0
    %v162 = vadd.f32 %v159, %v161
    %163 = vadd.xlane.f32.xlu0 %v162
    %v164 = vpop.xlane.xlu0 %163
    %v165 = vmul.f32 %v164, 0.00295858
    %v166 = vsub.f32 %v111, %v165
    %v167 = vsub.f32 %v113, %v165
    %v168 = vsub.f32 %v152, %v165
    %v169 = vmul.f32 %v166, %v166
    %v170 = vmul.f32 %v167, %v167
    %v171 = vmul.f32 %v168, %v168
    %v172 = vadd.f32 %v169, %v170
    %v173 = vsel %vm160, %v171, 0.0
    %v174 = vadd.f32 %v172, %v173
    %175 = vadd.xlane.f32.xlu0 %v174
    %v176 = vpop.xlane.xlu0 %175
    %v177 = vmul.f32 %v176, 0.00295858
    %v178 = vadd.f32 %v177, 1e-05
    %v179 = vrsqrt.pop %v178
    %v180 = vmul.f32 %v157, %v179
    %182 = vset.pattern.permute.xlu0 0
    %183 = vperm.xlu0 %182, %v180
    %v184 = vpop.permute.xlu0 %183
    %v186 = vmul.f32 %v184, %v166
    %v187 = vmul.f32 %v184, %v167
    %v188 = vmul.f32 %v184, %v168
    %190 = vset.pattern.permute.xlu0 0
    %191 = vperm.xlu0 %190, %v158
    %v192 = vpop.permute.xlu0 %191
    %v194 = vadd.f32 %v186, %v192
    %v195 = vadd.f32 %v187, %v192
    %v196 = vadd.f32 %v188, %v192
    %v197 = vmul.f32 %v194, 0.2
    %v198 = vmul.f32 %v195, 0.2
    %v199 = vmul.f32 %v196, 0.2
    %v200 = vmax.f32 %v194, %v197
    %v201 = vmax.f32 %v195, %v198
    %v202 = vmax.f32 %v196, %v199
    %v203 = vpack.c.bf16 %v200, %v200
    %v204 = vpack.c.bf16 %v201, %v201
    %v205 = vpack.c.bf16 %v202, %v202
    %v206 = vld [vmem:[%s5] sm:$0xff]
    %v207 = vld [vmem:[%s5 + $0x8] sm:$0xff]
    %v208 = vld [vmem:[%s5 + $0x10] sm:$0xff]
    %v209 = vld [vmem:[%s5 + $0x18] sm:$0xf]
    %v210 = vld [vmem:[%s5 + $0x1c] sm:$0xff]
    %v211 = vld [vmem:[%s5 + $0x24] sm:$0xff]
    %v212 = vld [vmem:[%s5 + $0x2c] sm:$0xff]
    %v213 = vld [vmem:[%s5 + $0x34] sm:$0xf]
    %v214 = vld [vmem:[%s5 + $0x38] sm:$0xff]
    %v215 = vld [vmem:[%s5 + $0x40] sm:$0xff]
    %v216 = vld [vmem:[%s5 + $0x48] sm:$0xff]
    %v217 = vld [vmem:[%s5 + $0x50] sm:$0xf]
    %v218 = vld [vmem:[%s5 + $0x54] sm:$0xff]
    %v219 = vld [vmem:[%s5 + $0x5c] sm:$0xff]
    %v220 = vld [vmem:[%s5 + $0x64] sm:$0xff]
    %v221 = vld [vmem:[%s5 + $0x6c] sm:$0xf]
    %v222 = vld [vmem:[%s5 + $0x70] sm:$0xff]
    %v223 = vld [vmem:[%s5 + $0x78] sm:$0xff]
    %v224 = vld [vmem:[%s5 + $0x80] sm:$0xff]
    %v225 = vld [vmem:[%s5 + $0x88] sm:$0xf]
    %v226 = vld [vmem:[%s5 + $0x8c] sm:$0xff]
    %v227 = vld [vmem:[%s5 + $0x94] sm:$0xff]
    %v228 = vld [vmem:[%s5 + $0x9c] sm:$0xff]
    %v229 = vld [vmem:[%s5 + $0xa4] sm:$0xf]
    %v230 = vld [vmem:[%s5 + $0xa8] sm:$0xff]
    %v231 = vld [vmem:[%s5 + $0xb0] sm:$0xff]
    %v232 = vld [vmem:[%s5 + $0xb8] sm:$0xff]
    %v233 = vld [vmem:[%s5 + $0xc0] sm:$0xf]
    %v234 = vld [vmem:[%s5 + $0xc4] sm:$0xff]
    %v235 = vld [vmem:[%s5 + $0xcc] sm:$0xff]
    %v236 = vld [vmem:[%s5 + $0xd4] sm:$0xff]
    %v237 = vld [vmem:[%s5 + $0xdc] sm:$0xf]
    %v238 = vld [vmem:[%s5 + $0xe0] sm:$0xff]
    %v239 = vld [vmem:[%s5 + $0xe8] sm:$0xff]
    %v240 = vld [vmem:[%s5 + $0xf0] sm:$0xff]
    %v241 = vld [vmem:[%s5 + $0xf8] sm:$0xf]
    %v242 = vld [vmem:[%s5 + $0xfc] sm:$0xff]
    %v243 = vld [vmem:[%s5 + $0x104] sm:$0xff]
    %v244 = vld [vmem:[%s5 + $0x10c] sm:$0xff]
    %v245 = vld [vmem:[%s5 + $0x114] sm:$0xf]
    %v246 = vld [vmem:[%s5 + $0x118] sm:$0xff]
    %v247 = vld [vmem:[%s5 + $0x120] sm:$0xff]
    %v248 = vld [vmem:[%s5 + $0x128] sm:$0xff]
    %v249 = vld [vmem:[%s5 + $0x130] sm:$0xf]
    %v250 = vld [vmem:[%s5 + $0x134] sm:$0xff]
    %v251 = vld [vmem:[%s5 + $0x13c] sm:$0xff]
    %v252 = vld [vmem:[%s5 + $0x144] sm:$0xff]
    %v253 = vld [vmem:[%s5 + $0x14c] sm:$0xf]
    %v254 = vld [vmem:[%s5 + $0x150] sm:$0xff]
    %v255 = vld [vmem:[%s5 + $0x158] sm:$0xff]
    %v256 = vld [vmem:[%s5 + $0x160] sm:$0xff]
    %v257 = vld [vmem:[%s5 + $0x168] sm:$0xf]
    %v258 = vld [vmem:[%s5 + $0x16c] sm:$0xff]
    %v259 = vld [vmem:[%s5 + $0x174] sm:$0xff]
    %v260 = vld [vmem:[%s5 + $0x17c] sm:$0xff]
    %v261 = vld [vmem:[%s5 + $0x184] sm:$0xf]
    %v262 = vld [vmem:[%s5 + $0x188] sm:$0xff]
    %v263 = vld [vmem:[%s5 + $0x190] sm:$0xff]
    %v264 = vld [vmem:[%s5 + $0x198] sm:$0xff]
    %v265 = vld [vmem:[%s5 + $0x1a0] sm:$0xf]
    %v266 = vld [vmem:[%s5 + $0x1a4] sm:$0xff]
    %v267 = vld [vmem:[%s5 + $0x1ac] sm:$0xff]
    %v268 = vld [vmem:[%s5 + $0x1b4] sm:$0xff]
    %v269 = vld [vmem:[%s5 + $0x1bc] sm:$0xf]
    %v270 = vld [vmem:[%s5 + $0x1c0] sm:$0xff]
    %v271 = vld [vmem:[%s5 + $0x1c8] sm:$0xff]
    %v272 = vld [vmem:[%s5 + $0x1d0] sm:$0xff]
    %v273 = vld [vmem:[%s5 + $0x1d8] sm:$0xf]
    %v274 = vld [vmem:[%s5 + $0x1dc] sm:$0xff]
    %v275 = vld [vmem:[%s5 + $0x1e4] sm:$0xff]
    %v276 = vld [vmem:[%s5 + $0x1ec] sm:$0xff]
    %v277 = vld [vmem:[%s5 + $0x1f4] sm:$0xf]
    %v278 = vld [vmem:[%s5 + $0x1f8] sm:$0xff]
    %v279 = vld [vmem:[%s5 + $0x200] sm:$0xff]
    %v280 = vld [vmem:[%s5 + $0x208] sm:$0xff]
    %v281 = vld [vmem:[%s5 + $0x210] sm:$0xf]
    %v282 = vld [vmem:[%s5 + $0x214] sm:$0xff]
    %v283 = vld [vmem:[%s5 + $0x21c] sm:$0xff]
    %v284 = vld [vmem:[%s5 + $0x224] sm:$0xff]
    %v285 = vld [vmem:[%s5 + $0x22c] sm:$0xf]
    %v286 = vld [vmem:[%s5 + $0x230] sm:$0xff]
    %v287 = vld [vmem:[%s5 + $0x238] sm:$0xff]
    %v288 = vld [vmem:[%s5 + $0x240] sm:$0xff]
    %v289 = vld [vmem:[%s5 + $0x248] sm:$0xf]
    %v290 = vld [vmem:[%s5 + $0x24c] sm:$0xff]
    %v291 = vld [vmem:[%s5 + $0x254] sm:$0xff]
    %v292 = vld [vmem:[%s5 + $0x25c] sm:$0xff]
    %v293 = vld [vmem:[%s5 + $0x264] sm:$0xf]
    %v294 = vld [vmem:[%s5 + $0x268] sm:$0xff]
    %v295 = vld [vmem:[%s5 + $0x270] sm:$0xff]
    %v296 = vld [vmem:[%s5 + $0x278] sm:$0xff]
    %v297 = vld [vmem:[%s5 + $0x280] sm:$0xf]
    %v298 = vld [vmem:[%s5 + $0x284] sm:$0xff]
    %v299 = vld [vmem:[%s5 + $0x28c] sm:$0xff]
    %v300 = vld [vmem:[%s5 + $0x294] sm:$0xff]
    %v301 = vld [vmem:[%s5 + $0x29c] sm:$0xf]
    %v302 = vld [vmem:[%s5 + $0x2a0] sm:$0xff]
    %v303 = vld [vmem:[%s5 + $0x2a8] sm:$0xff]
    %v304 = vld [vmem:[%s5 + $0x2b0] sm:$0xff]
    %v305 = vld [vmem:[%s5 + $0x2b8] sm:$0xf]
    %v306 = vld [vmem:[%s5 + $0x2bc] sm:$0xff]
    %v307 = vld [vmem:[%s5 + $0x2c4] sm:$0xff]
    %v308 = vld [vmem:[%s5 + $0x2cc] sm:$0xff]
    %v309 = vld [vmem:[%s5 + $0x2d4] sm:$0xf]
    %v310 = vld [vmem:[%s5 + $0x2d8] sm:$0xff]
    %v311 = vld [vmem:[%s5 + $0x2e0] sm:$0xff]
    %v312 = vld [vmem:[%s5 + $0x2e8] sm:$0xff]
    %v313 = vld [vmem:[%s5 + $0x2f0] sm:$0xf]
    %v314 = vld [vmem:[%s5 + $0x2f4] sm:$0xff]
    %v315 = vld [vmem:[%s5 + $0x2fc] sm:$0xff]
    %v316 = vld [vmem:[%s5 + $0x304] sm:$0xff]
    %v317 = vld [vmem:[%s5 + $0x30c] sm:$0xf]
    %v318 = vld [vmem:[%s5 + $0x310] sm:$0xff]
    %v319 = vld [vmem:[%s5 + $0x318] sm:$0xff]
    %v320 = vld [vmem:[%s5 + $0x320] sm:$0xff]
    %v321 = vld [vmem:[%s5 + $0x328] sm:$0xf]
    %v322 = vld [vmem:[%s5 + $0x32c] sm:$0xff]
    %v323 = vld [vmem:[%s5 + $0x334] sm:$0xff]
    %v324 = vld [vmem:[%s5 + $0x33c] sm:$0xff]
    %v325 = vld [vmem:[%s5 + $0x344] sm:$0xf]
    %v326 = vld [vmem:[%s5 + $0x348] sm:$0xff]
    %v327 = vld [vmem:[%s5 + $0x350] sm:$0xff]
    %v328 = vld [vmem:[%s5 + $0x358] sm:$0xff]
    %v329 = vld [vmem:[%s5 + $0x360] sm:$0xf]
    %v330 = vld [vmem:[%s5 + $0x364] sm:$0xff]
    %v331 = vld [vmem:[%s5 + $0x36c] sm:$0xff]
    %v332 = vld [vmem:[%s5 + $0x374] sm:$0xff]
    %v333 = vld [vmem:[%s5 + $0x37c] sm:$0xf]
    %v334 = vld [vmem:[%s5 + $0x380] sm:$0xff]
    %v335 = vld [vmem:[%s5 + $0x388] sm:$0xff]
    %v336 = vld [vmem:[%s5 + $0x390] sm:$0xff]
    %v337 = vld [vmem:[%s5 + $0x398] sm:$0xf]
    %v338 = vld [vmem:[%s5 + $0x39c] sm:$0xff]
    %v339 = vld [vmem:[%s5 + $0x3a4] sm:$0xff]
    %v340 = vld [vmem:[%s5 + $0x3ac] sm:$0xff]
    %v341 = vld [vmem:[%s5 + $0x3b4] sm:$0xf]
    %v342 = vld [vmem:[%s5 + $0x3b8] sm:$0xff]
    %v343 = vld [vmem:[%s5 + $0x3c0] sm:$0xff]
    %v344 = vld [vmem:[%s5 + $0x3c8] sm:$0xff]
    %v345 = vld [vmem:[%s5 + $0x3d0] sm:$0xf]
    %v346 = vld [vmem:[%s5 + $0x3d4] sm:$0xff]
    %v347 = vld [vmem:[%s5 + $0x3dc] sm:$0xff]
    %v348 = vld [vmem:[%s5 + $0x3e4] sm:$0xff]
    %v349 = vld [vmem:[%s5 + $0x3ec] sm:$0xf]
    %v350 = vld [vmem:[%s5 + $0x3f0] sm:$0xff]
    %v351 = vld [vmem:[%s5 + $0x3f8] sm:$0xff]
    %v352 = vld [vmem:[%s5 + $0x400] sm:$0xff]
    %v353 = vld [vmem:[%s5 + $0x408] sm:$0xf]
    %v354 = vld [vmem:[%s5 + $0x40c] sm:$0xff]
    %v355 = vld [vmem:[%s5 + $0x414] sm:$0xff]
    %v356 = vld [vmem:[%s5 + $0x41c] sm:$0xff]
    %v357 = vld [vmem:[%s5 + $0x424] sm:$0xf]
    %v358 = vld [vmem:[%s5 + $0x428] sm:$0xff]
    %v359 = vld [vmem:[%s5 + $0x430] sm:$0xff]
    %v360 = vld [vmem:[%s5 + $0x438] sm:$0xff]
    %v361 = vld [vmem:[%s5 + $0x440] sm:$0xf]
    %v362 = vld [vmem:[%s5 + $0x444] sm:$0xff]
    %v363 = vld [vmem:[%s5 + $0x44c] sm:$0xff]
    %v364 = vld [vmem:[%s5 + $0x454] sm:$0xff]
    %v365 = vld [vmem:[%s5 + $0x45c] sm:$0xf]
    %v366 = vld [vmem:[%s5 + $0x460] sm:$0xff]
    %v367 = vld [vmem:[%s5 + $0x468] sm:$0xff]
    %v368 = vld [vmem:[%s5 + $0x470] sm:$0xff]
    %v369 = vld [vmem:[%s5 + $0x478] sm:$0xf]
    %v370 = vld [vmem:[%s5 + $0x47c] sm:$0xff]
    %v371 = vld [vmem:[%s5 + $0x484] sm:$0xff]
    %v372 = vld [vmem:[%s5 + $0x48c] sm:$0xff]
    %v373 = vld [vmem:[%s5 + $0x494] sm:$0xf]
    %v374 = vld [vmem:[%s5 + $0x498] sm:$0x11]
    %v375 = vld [vmem:[%s5 + $0x4a0] sm:$0x11]
    %v376 = vld [vmem:[%s5 + $0x4a8] sm:$0x11]
    %v377 = vld [vmem:[%s5 + $0x4b0] sm:$0x1]
    %v550 = vunpack.c.l.b16 %v206
    %v551 = vunpack.c.h.b16 %v206
    %v552 = vunpack.c.l.b16 %v207
    %v553 = vunpack.c.h.b16 %v207
    %v554 = vunpack.c.l.b16 %v208
    %v555 = vunpack.c.h.b16 %v208
    %v556 = vunpack.c.l.b16 %v209
    %v557 = vunpack.c.l.b16 %v210
    %v558 = vunpack.c.h.b16 %v210
    %v559 = vunpack.c.l.b16 %v211
    %v560 = vunpack.c.h.b16 %v211
    %v561 = vunpack.c.l.b16 %v212
    %v562 = vunpack.c.h.b16 %v212
    %v563 = vunpack.c.l.b16 %v213
    %v564 = vunpack.c.l.b16 %v214
    %v565 = vunpack.c.h.b16 %v214
    %v566 = vunpack.c.l.b16 %v215
    %v567 = vunpack.c.h.b16 %v215
    %v568 = vunpack.c.l.b16 %v216
    %v569 = vunpack.c.h.b16 %v216
    %v570 = vunpack.c.l.b16 %v217
    %v571 = vunpack.c.l.b16 %v218
    %v572 = vunpack.c.h.b16 %v218
    %v573 = vunpack.c.l.b16 %v219
    %v574 = vunpack.c.h.b16 %v219
    %v575 = vunpack.c.l.b16 %v220
    %v576 = vunpack.c.h.b16 %v220
    %v577 = vunpack.c.l.b16 %v221
    %v578 = vunpack.c.l.b16 %v222
    %v579 = vunpack.c.h.b16 %v222
    %v580 = vunpack.c.l.b16 %v223
    %v581 = vunpack.c.h.b16 %v223
    %v582 = vunpack.c.l.b16 %v224
    %v583 = vunpack.c.h.b16 %v224
    %v584 = vunpack.c.l.b16 %v225
    %v585 = vunpack.c.l.b16 %v226
    %v586 = vunpack.c.h.b16 %v226
    %v587 = vunpack.c.l.b16 %v227
    %v588 = vunpack.c.h.b16 %v227
    %v589 = vunpack.c.l.b16 %v228
    %v590 = vunpack.c.h.b16 %v228
    %v591 = vunpack.c.l.b16 %v229
    %v592 = vunpack.c.l.b16 %v230
    %v593 = vunpack.c.h.b16 %v230
    %v594 = vunpack.c.l.b16 %v231
    %v595 = vunpack.c.h.b16 %v231
    %v596 = vunpack.c.l.b16 %v232
    %v597 = vunpack.c.h.b16 %v232
    %v598 = vunpack.c.l.b16 %v233
    %v599 = vunpack.c.l.b16 %v234
    %v600 = vunpack.c.h.b16 %v234
    %v601 = vunpack.c.l.b16 %v235
    %v602 = vunpack.c.h.b16 %v235
    %v603 = vunpack.c.l.b16 %v236
    %v604 = vunpack.c.h.b16 %v236
    %v605 = vunpack.c.l.b16 %v237
    %v606 = vunpack.c.l.b16 %v238
    %v607 = vunpack.c.h.b16 %v238
    %v608 = vunpack.c.l.b16 %v239
    %v609 = vunpack.c.h.b16 %v239
    %v610 = vunpack.c.l.b16 %v240
    %v611 = vunpack.c.h.b16 %v240
    %v612 = vunpack.c.l.b16 %v241
    %v613 = vunpack.c.l.b16 %v242
    %v614 = vunpack.c.h.b16 %v242
    %v615 = vunpack.c.l.b16 %v243
    %v616 = vunpack.c.h.b16 %v243
    %v617 = vunpack.c.l.b16 %v244
    %v618 = vunpack.c.h.b16 %v244
    %v619 = vunpack.c.l.b16 %v245
    %v620 = vunpack.c.l.b16 %v246
    %v621 = vunpack.c.h.b16 %v246
    %v622 = vunpack.c.l.b16 %v247
    %v623 = vunpack.c.h.b16 %v247
    %v624 = vunpack.c.l.b16 %v248
    %v625 = vunpack.c.h.b16 %v248
    %v626 = vunpack.c.l.b16 %v249
    %v627 = vunpack.c.l.b16 %v250
    %v628 = vunpack.c.h.b16 %v250
    %v629 = vunpack.c.l.b16 %v251
    %v630 = vunpack.c.h.b16 %v251
    %v631 = vunpack.c.l.b16 %v252
    %v632 = vunpack.c.h.b16 %v252
    %v633 = vunpack.c.l.b16 %v253
    %v634 = vunpack.c.l.b16 %v254
    %v635 = vunpack.c.h.b16 %v254
    %v636 = vunpack.c.l.b16 %v255
    %v637 = vunpack.c.h.b16 %v255
    %v638 = vunpack.c.l.b16 %v256
    %v639 = vunpack.c.h.b16 %v256
    %v640 = vunpack.c.l.b16 %v257
    %v641 = vunpack.c.l.b16 %v258
    %v642 = vunpack.c.h.b16 %v258
    %v643 = vunpack.c.l.b16 %v259
    %v644 = vunpack.c.h.b16 %v259
    %v645 = vunpack.c.l.b16 %v260
    %v646 = vunpack.c.h.b16 %v260
    %v647 = vunpack.c.l.b16 %v261
    %v648 = vunpack.c.l.b16 %v262
    %v649 = vunpack.c.h.b16 %v262
    %v650 = vunpack.c.l.b16 %v263
    %v651 = vunpack.c.h.b16 %v263
    %v652 = vunpack.c.l.b16 %v264
    %v653 = vunpack.c.h.b16 %v264
    %v654 = vunpack.c.l.b16 %v265
    %v655 = vunpack.c.l.b16 %v266
    %v656 = vunpack.c.h.b16 %v266
    %v657 = vunpack.c.l.b16 %v267
    %v658 = vunpack.c.h.b16 %v267
    %v659 = vunpack.c.l.b16 %v268
    %v660 = vunpack.c.h.b16 %v268
    %v661 = vunpack.c.l.b16 %v269
    %v662 = vunpack.c.l.b16 %v270
    %v663 = vunpack.c.h.b16 %v270
    %v664 = vunpack.c.l.b16 %v271
    %v665 = vunpack.c.h.b16 %v271
    %v666 = vunpack.c.l.b16 %v272
    %v667 = vunpack.c.h.b16 %v272
    %v668 = vunpack.c.l.b16 %v273
    %v669 = vunpack.c.l.b16 %v274
    %v670 = vunpack.c.h.b16 %v274
    %v671 = vunpack.c.l.b16 %v275
    %v672 = vunpack.c.h.b16 %v275
    %v673 = vunpack.c.l.b16 %v276
    %v674 = vunpack.c.h.b16 %v276
    %v675 = vunpack.c.l.b16 %v277
    %v676 = vunpack.c.l.b16 %v278
    %v677 = vunpack.c.h.b16 %v278
    %v678 = vunpack.c.l.b16 %v279
    %v679 = vunpack.c.h.b16 %v279
    %v680 = vunpack.c.l.b16 %v280
    %v681 = vunpack.c.h.b16 %v280
    %v682 = vunpack.c.l.b16 %v281
    %v683 = vunpack.c.l.b16 %v282
    %v684 = vunpack.c.h.b16 %v282
    %v685 = vunpack.c.l.b16 %v283
    %v686 = vunpack.c.h.b16 %v283
    %v687 = vunpack.c.l.b16 %v284
    %v688 = vunpack.c.h.b16 %v284
    %v689 = vunpack.c.l.b16 %v285
    %v690 = vunpack.c.l.b16 %v286
    %v691 = vunpack.c.h.b16 %v286
    %v692 = vunpack.c.l.b16 %v287
    %v693 = vunpack.c.h.b16 %v287
    %v694 = vunpack.c.l.b16 %v288
    %v695 = vunpack.c.h.b16 %v288
    %v696 = vunpack.c.l.b16 %v289
    %v697 = vunpack.c.l.b16 %v290
    %v698 = vunpack.c.h.b16 %v290
    %v699 = vunpack.c.l.b16 %v291
    %v700 = vunpack.c.h.b16 %v291
    %v701 = vunpack.c.l.b16 %v292
    %v702 = vunpack.c.h.b16 %v292
    %v703 = vunpack.c.l.b16 %v293
    %v704 = vunpack.c.l.b16 %v294
    %v705 = vunpack.c.h.b16 %v294
    %v706 = vunpack.c.l.b16 %v295
    %v707 = vunpack.c.h.b16 %v295
    %v708 = vunpack.c.l.b16 %v296
    %v709 = vunpack.c.h.b16 %v296
    %v710 = vunpack.c.l.b16 %v297
    %v711 = vunpack.c.l.b16 %v298
    %v712 = vunpack.c.h.b16 %v298
    %v713 = vunpack.c.l.b16 %v299
    %v714 = vunpack.c.h.b16 %v299
    %v715 = vunpack.c.l.b16 %v300
    %v716 = vunpack.c.h.b16 %v300
    %v717 = vunpack.c.l.b16 %v301
    %v718 = vunpack.c.l.b16 %v302
    %v719 = vunpack.c.h.b16 %v302
    %v720 = vunpack.c.l.b16 %v303
    %v721 = vunpack.c.h.b16 %v303
    %v722 = vunpack.c.l.b16 %v304
    %v723 = vunpack.c.h.b16 %v304
    %v724 = vunpack.c.l.b16 %v305
    %v725 = vunpack.c.l.b16 %v306
    %v726 = vunpack.c.h.b16 %v306
    %v727 = vunpack.c.l.b16 %v307
    %v728 = vunpack.c.h.b16 %v307
    %v729 = vunpack.c.l.b16 %v308
    %v730 = vunpack.c.h.b16 %v308
    %v731 = vunpack.c.l.b16 %v309
    %v732 = vunpack.c.l.b16 %v310
    %v733 = vunpack.c.h.b16 %v310
    %v734 = vunpack.c.l.b16 %v311
    %v735 = vunpack.c.h.b16 %v311
    %v736 = vunpack.c.l.b16 %v312
    %v737 = vunpack.c.h.b16 %v312
    %v738 = vunpack.c.l.b16 %v313
    %v739 = vunpack.c.l.b16 %v314
    %v740 = vunpack.c.h.b16 %v314
    %v741 = vunpack.c.l.b16 %v315
    %v742 = vunpack.c.h.b16 %v315
    %v743 = vunpack.c.l.b16 %v316
    %v744 = vunpack.c.h.b16 %v316
    %v745 = vunpack.c.l.b16 %v317
    %v746 = vunpack.c.l.b16 %v318
    %v747 = vunpack.c.h.b16 %v318
    %v748 = vunpack.c.l.b16 %v319
    %v749 = vunpack.c.h.b16 %v319
    %v750 = vunpack.c.l.b16 %v320
    %v751 = vunpack.c.h.b16 %v320
    %v752 = vunpack.c.l.b16 %v321
    %v753 = vunpack.c.l.b16 %v322
    %v754 = vunpack.c.h.b16 %v322
    %v755 = vunpack.c.l.b16 %v323
    %v756 = vunpack.c.h.b16 %v323
    %v757 = vunpack.c.l.b16 %v324
    %v758 = vunpack.c.h.b16 %v324
    %v759 = vunpack.c.l.b16 %v325
    %v760 = vunpack.c.l.b16 %v326
    %v761 = vunpack.c.h.b16 %v326
    %v762 = vunpack.c.l.b16 %v327
    %v763 = vunpack.c.h.b16 %v327
    %v764 = vunpack.c.l.b16 %v328
    %v765 = vunpack.c.h.b16 %v328
    %v766 = vunpack.c.l.b16 %v329
    %v767 = vunpack.c.l.b16 %v330
    %v768 = vunpack.c.h.b16 %v330
    %v769 = vunpack.c.l.b16 %v331
    %v770 = vunpack.c.h.b16 %v331
    %v771 = vunpack.c.l.b16 %v332
    %v772 = vunpack.c.h.b16 %v332
    %v773 = vunpack.c.l.b16 %v333
    %v774 = vunpack.c.l.b16 %v334
    %v775 = vunpack.c.h.b16 %v334
    %v776 = vunpack.c.l.b16 %v335
    %v777 = vunpack.c.h.b16 %v335
    %v778 = vunpack.c.l.b16 %v336
    %v779 = vunpack.c.h.b16 %v336
    %v780 = vunpack.c.l.b16 %v337
    %v781 = vunpack.c.l.b16 %v338
    %v782 = vunpack.c.h.b16 %v338
    %v783 = vunpack.c.l.b16 %v339
    %v784 = vunpack.c.h.b16 %v339
    %v785 = vunpack.c.l.b16 %v340
    %v786 = vunpack.c.h.b16 %v340
    %v787 = vunpack.c.l.b16 %v341
    %v788 = vunpack.c.l.b16 %v342
    %v789 = vunpack.c.h.b16 %v342
    %v790 = vunpack.c.l.b16 %v343
    %v791 = vunpack.c.h.b16 %v343
    %v792 = vunpack.c.l.b16 %v344
    %v793 = vunpack.c.h.b16 %v344
    %v794 = vunpack.c.l.b16 %v345
    %v795 = vunpack.c.l.b16 %v346
    %v796 = vunpack.c.h.b16 %v346
    %v797 = vunpack.c.l.b16 %v347
    %v798 = vunpack.c.h.b16 %v347
    %v799 = vunpack.c.l.b16 %v348
    %v800 = vunpack.c.h.b16 %v348
    %v801 = vunpack.c.l.b16 %v349
    %v802 = vunpack.c.l.b16 %v350
    %v803 = vunpack.c.h.b16 %v350
    %v804 = vunpack.c.l.b16 %v351
    %v805 = vunpack.c.h.b16 %v351
    %v806 = vunpack.c.l.b16 %v352
    %v807 = vunpack.c.h.b16 %v352
    %v808 = vunpack.c.l.b16 %v353
    %v809 = vunpack.c.l.b16 %v354
    %v810 = vunpack.c.h.b16 %v354
    %v811 = vunpack.c.l.b16 %v355
    %v812 = vunpack.c.h.b16 %v355
    %v813 = vunpack.c.l.b16 %v356
    %v814 = vunpack.c.h.b16 %v356
    %v815 = vunpack.c.l.b16 %v357
    %v816 = vunpack.c.l.b16 %v358
    %v817 = vunpack.c.h.b16 %v358
    %v818 = vunpack.c.l.b16 %v359
    %v819 = vunpack.c.h.b16 %v359
    %v820 = vunpack.c.l.b16 %v360
    %v821 = vunpack.c.h.b16 %v360
    %v822 = vunpack.c.l.b16 %v361
    %v823 = vunpack.c.l.b16 %v362
    %v824 = vunpack.c.h.b16 %v362
    %v825 = vunpack.c.l.b16 %v363
    %v826 = vunpack.c.h.b16 %v363
    %v827 = vunpack.c.l.b16 %v364
    %v828 = vunpack.c.h.b16 %v364
    %v829 = vunpack.c.l.b16 %v365
    %v830 = vunpack.c.l.b16 %v366
    %v831 = vunpack.c.h.b16 %v366
    %v832 = vunpack.c.l.b16 %v367
    %v833 = vunpack.c.h.b16 %v367
    %v834 = vunpack.c.l.b16 %v368
    %v835 = vunpack.c.h.b16 %v368
    %v836 = vunpack.c.l.b16 %v369
    %v837 = vunpack.c.l.b16 %v370
    %v838 = vunpack.c.h.b16 %v370
    %v839 = vunpack.c.l.b16 %v371
    %v840 = vunpack.c.h.b16 %v371
    %v841 = vunpack.c.l.b16 %v372
    %v842 = vunpack.c.h.b16 %v372
    %v843 = vunpack.c.l.b16 %v373
    %v844 = vunpack.c.l.b16 %v374
    %v845 = vunpack.c.h.b16 %v374
    %v846 = vunpack.c.l.b16 %v375
    %v847 = vunpack.c.h.b16 %v375
    %v848 = vunpack.c.l.b16 %v376
    %v849 = vunpack.c.h.b16 %v376
    %v850 = vunpack.c.l.b16 %v377
    %v851 = vpack.c.b16 %v557, %v550
    %v852 = vpack.c.b16 %v558, %v551
    %v853 = vpack.c.b16 %v559, %v552
    %v854 = vpack.c.b16 %v560, %v553
    %v855 = vpack.c.b16 %v561, %v554
    %v856 = vpack.c.b16 %v562, %v555
    %v857 = vpack.c.b16 %v563, %v556
    %v858 = vpack.c.b16 %v571, %v564
    %v859 = vpack.c.b16 %v572, %v565
    %v860 = vpack.c.b16 %v573, %v566
    %v861 = vpack.c.b16 %v574, %v567
    %v862 = vpack.c.b16 %v575, %v568
    %v863 = vpack.c.b16 %v576, %v569
    %v864 = vpack.c.b16 %v577, %v570
    %v865 = vpack.c.b16 %v585, %v578
    %v866 = vpack.c.b16 %v586, %v579
    %v867 = vpack.c.b16 %v587, %v580
    %v868 = vpack.c.b16 %v588, %v581
    %v869 = vpack.c.b16 %v589, %v582
    %v870 = vpack.c.b16 %v590, %v583
    %v871 = vpack.c.b16 %v591, %v584
    %v872 = vpack.c.b16 %v599, %v592
    %v873 = vpack.c.b16 %v600, %v593
    %v874 = vpack.c.b16 %v601, %v594
    %v875 = vpack.c.b16 %v602, %v595
    %v876 = vpack.c.b16 %v603, %v596
    %v877 = vpack.c.b16 %v604, %v597
    %v878 = vpack.c.b16 %v605, %v598
    %v879 = vpack.c.b16 %v613, %v606
    %v880 = vpack.c.b16 %v614, %v607
    %v881 = vpack.c.b16 %v615, %v608
    %v882 = vpack.c.b16 %v616, %v609
    %v883 = vpack.c.b16 %v617, %v610
    %v884 = vpack.c.b16 %v618, %v611
    %v885 = vpack.c.b16 %v619, %v612
    %v886 = vpack.c.b16 %v627, %v620
    %v887 = vpack.c.b16 %v628, %v621
    %v888 = vpack.c.b16 %v629, %v622
    %v889 = vpack.c.b16 %v630, %v623
    %v890 = vpack.c.b16 %v631, %v624
    %v891 = vpack.c.b16 %v632, %v625
    %v892 = vpack.c.b16 %v633, %v626
    %v893 = vpack.c.b16 %v641, %v634
    %v894 = vpack.c.b16 %v642, %v635
    %v895 = vpack.c.b16 %v643, %v636
    %v896 = vpack.c.b16 %v644, %v637
    %v897 = vpack.c.b16 %v645, %v638
    %v898 = vpack.c.b16 %v646, %v639
    %v899 = vpack.c.b16 %v647, %v640
    %v900 = vpack.c.b16 %v655, %v648
    %v901 = vpack.c.b16 %v656, %v649
    %v902 = vpack.c.b16 %v657, %v650
    %v903 = vpack.c.b16 %v658, %v651
    %v904 = vpack.c.b16 %v659, %v652
    %v905 = vpack.c.b16 %v660, %v653
    %v906 = vpack.c.b16 %v661, %v654
    %v907 = vpack.c.b16 %v669, %v662
    %v908 = vpack.c.b16 %v670, %v663
    %v909 = vpack.c.b16 %v671, %v664
    %v910 = vpack.c.b16 %v672, %v665
    %v911 = vpack.c.b16 %v673, %v666
    %v912 = vpack.c.b16 %v674, %v667
    %v913 = vpack.c.b16 %v675, %v668
    %v914 = vpack.c.b16 %v683, %v676
    %v915 = vpack.c.b16 %v684, %v677
    %v916 = vpack.c.b16 %v685, %v678
    %v917 = vpack.c.b16 %v686, %v679
    %v918 = vpack.c.b16 %v687, %v680
    %v919 = vpack.c.b16 %v688, %v681
    %v920 = vpack.c.b16 %v689, %v682
    %v921 = vpack.c.b16 %v697, %v690
    %v922 = vpack.c.b16 %v698, %v691
    %v923 = vpack.c.b16 %v699, %v692
    %v924 = vpack.c.b16 %v700, %v693
    %v925 = vpack.c.b16 %v701, %v694
    %v926 = vpack.c.b16 %v702, %v695
    %v927 = vpack.c.b16 %v703, %v696
    %v928 = vpack.c.b16 %v711, %v704
    %v929 = vpack.c.b16 %v712, %v705
    %v930 = vpack.c.b16 %v713, %v706
    %v931 = vpack.c.b16 %v714, %v707
    %v932 = vpack.c.b16 %v715, %v708
    %v933 = vpack.c.b16 %v716, %v709
    %v934 = vpack.c.b16 %v717, %v710
    %v935 = vpack.c.b16 %v725, %v718
    %v936 = vpack.c.b16 %v726, %v719
    %v937 = vpack.c.b16 %v727, %v720
    %v938 = vpack.c.b16 %v728, %v721
    %v939 = vpack.c.b16 %v729, %v722
    %v940 = vpack.c.b16 %v730, %v723
    %v941 = vpack.c.b16 %v731, %v724
    %v942 = vpack.c.b16 %v739, %v732
    %v943 = vpack.c.b16 %v740, %v733
    %v944 = vpack.c.b16 %v741, %v734
    %v945 = vpack.c.b16 %v742, %v735
    %v946 = vpack.c.b16 %v743, %v736
    %v947 = vpack.c.b16 %v744, %v737
    %v948 = vpack.c.b16 %v745, %v738
    %v949 = vpack.c.b16 %v753, %v746
    %v950 = vpack.c.b16 %v754, %v747
    %v951 = vpack.c.b16 %v755, %v748
    %v952 = vpack.c.b16 %v756, %v749
    %v953 = vpack.c.b16 %v757, %v750
    %v954 = vpack.c.b16 %v758, %v751
    %v955 = vpack.c.b16 %v759, %v752
    %v956 = vpack.c.b16 %v767, %v760
    %v957 = vpack.c.b16 %v768, %v761
    %v958 = vpack.c.b16 %v769, %v762
    %v959 = vpack.c.b16 %v770, %v763
    %v960 = vpack.c.b16 %v771, %v764
    %v961 = vpack.c.b16 %v772, %v765
    %v962 = vpack.c.b16 %v773, %v766
    %v963 = vpack.c.b16 %v781, %v774
    %v964 = vpack.c.b16 %v782, %v775
    %v965 = vpack.c.b16 %v783, %v776
    %v966 = vpack.c.b16 %v784, %v777
    %v967 = vpack.c.b16 %v785, %v778
    %v968 = vpack.c.b16 %v786, %v779
    %v969 = vpack.c.b16 %v787, %v780
    %v970 = vpack.c.b16 %v795, %v788
    %v971 = vpack.c.b16 %v796, %v789
    %v972 = vpack.c.b16 %v797, %v790
    %v973 = vpack.c.b16 %v798, %v791
    %v974 = vpack.c.b16 %v799, %v792
    %v975 = vpack.c.b16 %v800, %v793
    %v976 = vpack.c.b16 %v801, %v794
    %v977 = vpack.c.b16 %v809, %v802
    %v978 = vpack.c.b16 %v810, %v803
    %v979 = vpack.c.b16 %v811, %v804
    %v980 = vpack.c.b16 %v812, %v805
    %v981 = vpack.c.b16 %v813, %v806
    %v982 = vpack.c.b16 %v814, %v807
    %v983 = vpack.c.b16 %v815, %v808
    %v984 = vpack.c.b16 %v823, %v816
    %v985 = vpack.c.b16 %v824, %v817
    %v986 = vpack.c.b16 %v825, %v818
    %v987 = vpack.c.b16 %v826, %v819
    %v988 = vpack.c.b16 %v827, %v820
    %v989 = vpack.c.b16 %v828, %v821
    %v990 = vpack.c.b16 %v829, %v822
    %v991 = vpack.c.b16 %v837, %v830
    %v992 = vpack.c.b16 %v838, %v831
    %v993 = vpack.c.b16 %v839, %v832
    %v994 = vpack.c.b16 %v840, %v833
    %v995 = vpack.c.b16 %v841, %v834
    %v996 = vpack.c.b16 %v842, %v835
    %v997 = vpack.c.b16 %v843, %v836
    %v998 = vpack.c.b16 %v844, %v844
    %v999 = vpack.c.b16 %v845, %v845
    %v1000 = vpack.c.b16 %v846, %v846
    %v1001 = vpack.c.b16 %v847, %v847
    %v1002 = vpack.c.b16 %v848, %v848
    %v1003 = vpack.c.b16 %v849, %v849
    %v1004 = vpack.c.b16 %v850, %v850
    %v1153 = vsel %vm160, %v205, 0
    %vm1155 = vcmask 1040384
    %v1157 = vsel %vm1155, %v998, 0
    %v1160 = vsel %vm1155, %v999, 0
    %v1163 = vsel %vm1155, %v1000, 0
    %v1166 = vsel %vm1155, %v1001, 0
    %v1169 = vsel %vm1155, %v1002, 0
    %v1172 = vsel %vm1155, %v1003, 0
    %v1175 = vsel %vm1155, %v1004, 0
    %1177 = vmatprep.subr.bf16.mxu0 %v852
    %1178 = vmatpush1.bf16.msra.mxu0 %v851
    %1179 = vmatprep.subr.bf16.mxu0 %v859
    %1180 = vmatpush1.bf16.msra.mxu0 %v858
    %1181 = vmatprep.subr.bf16.mxu0 %v866
    %1182 = vmatpush1.bf16.msra.mxu0 %v865
    %1183 = vmatprep.subr.bf16.mxu0 %v873
    %1184 = vmatpush1.bf16.msra.mxu0 %v872
    %1185 = vmatprep.subr.bf16.mxu0 %v880
    %1186 = vmatpush1.bf16.msra.mxu0 %v879
    %1187 = vmatprep.subr.bf16.mxu0 %v887
    %1188 = vmatpush1.bf16.msra.mxu0 %v886
    %1189 = vmatprep.subr.bf16.mxu0 %v894
    %1190 = vmatpush1.bf16.msra.mxu0 %v893
    %1191 = vmatprep.subr.bf16.mxu0 %v901
    %1192 = vmatpush1.bf16.msra.mxu0 %v900
    %1193 = vmatprep.subr.bf16.mxu0 %v908
    %1194 = vmatpush1.bf16.msra.mxu0 %v907
    %1195 = vmatprep.subr.bf16.mxu0 %v915
    %1196 = vmatpush1.bf16.msra.mxu0 %v914
    %1197 = vmatprep.subr.bf16.mxu0 %v922
    %1198 = vmatpush1.bf16.msra.mxu0 %v921
    %1199 = vmatprep.subr.bf16.mxu0 %v929
    %1200 = vmatpush1.bf16.msra.mxu0 %v928
    %1201 = vmatprep.subr.bf16.mxu0 %v936
    %1202 = vmatpush1.bf16.msra.mxu0 %v935
    %1203 = vmatprep.subr.bf16.mxu0 %v943
    %1204 = vmatpush1.bf16.msra.mxu0 %v942
    %1205 = vmatprep.subr.bf16.mxu0 %v950
    %1206 = vmatpush1.bf16.msra.mxu0 %v949
    %1207 = vmatprep.subr.bf16.mxu0 %v957
    %1208 = vmatpush1.bf16.msra.mxu0 %v956
    %1209 = vmatprep.mubr.bf16.mxu0 %v204
    %1210 = vmatmul.mubr.bf16.gmra.mrb[0].mxu0 %v203
    %v1211 = vpop.f32.mrb[0].mxu0
    %v1212 = vadd.f32 0.0, %v1211
    %v1213 = vpop.f32.mrb[0].mxu0
    %v1214 = vadd.f32 0.0, %v1213
    %v1215 = vpop.f32.mrb[0].mxu0
    %v1216 = vpop.f32.mrb[0].mxu0
    %1217 = vdwg.mxu0
    %1218 = vmatprep.subr.bf16.mxu0 %v964
    %1219 = vmatpush1.bf16.msra.mxu0 %v963
    %1220 = vmatprep.subr.bf16.mxu0 %v971
    %1221 = vmatpush1.bf16.msra.mxu0 %v970
    %1222 = vmatprep.subr.bf16.mxu0 %v978
    %1223 = vmatpush1.bf16.msra.mxu0 %v977
    %1224 = vmatprep.subr.bf16.mxu0 %v985
    %1225 = vmatpush1.bf16.msra.mxu0 %v984
    %1226 = vmatprep.subr.bf16.mxu0 %v992
    %1227 = vmatpush1.bf16.msra.mxu0 %v991
    %1228 = vmatprep.subr.bf16.mxu0 %v1160
    %1229 = vmatpush1.bf16.msra.mxu0 %v1157
    %1230 = vmatprep.subr.bf16.mxu0 0
    %1231 = vmatpush1.bf16.msra.mxu0 0
    %1232 = vmatprep.subr.bf16.mxu0 0
    %1233 = vmatpush1.bf16.msra.mxu0 0
    %1234 = vmatprep.subr.bf16.mxu0 0
    %1235 = vmatpush1.bf16.msra.mxu0 0
    %1236 = vmatprep.subr.bf16.mxu0 0
    %1237 = vmatpush1.bf16.msra.mxu0 0
    %1238 = vmatprep.subr.bf16.mxu0 0
    %1239 = vmatpush1.bf16.msra.mxu0 0
    %1240 = vmatprep.subr.bf16.mxu0 0
    %1241 = vmatpush1.bf16.msra.mxu0 0
    %1242 = vmatprep.subr.bf16.mxu0 0
    %1243 = vmatpush1.bf16.msra.mxu0 0
    %1244 = vmatprep.subr.bf16.mxu0 0
    %1245 = vmatpush1.bf16.msra.mxu0 0
    %1246 = vmatprep.subr.bf16.mxu0 0
    %1247 = vmatpush1.bf16.msra.mxu0 0
    %1248 = vmatprep.subr.bf16.mxu0 0
    %1249 = vmatpush1.bf16.msra.mxu0 0
    %1250 = vmatprep.mubr.bf16.mxu0 0
    %1251 = vmatmul.mubr.bf16.gmra.mrb[0].mxu0 %v1153
    %v1252 = vpop.f32.mrb[0].mxu0
    %v1253 = vadd.f32 %v1212, %v1252
    %v1254 = vpop.f32.mrb[0].mxu0
    %v1255 = vadd.f32 %v1214, %v1254
    %v1256 = vpop.f32.mrb[0].mxu0
    %v1257 = vpop.f32.mrb[0].mxu0
    %1258 = vdwg.mxu0
    %1259 = vmatprep.subr.bf16.mxu0 %v854
    %1260 = vmatpush1.bf16.msra.mxu0 %v853
    %1261 = vmatprep.subr.bf16.mxu0 %v861
    %1262 = vmatpush1.bf16.msra.mxu0 %v860
    %1263 = vmatprep.subr.bf16.mxu0 %v868
    %1264 = vmatpush1.bf16.msra.mxu0 %v867
    %1265 = vmatprep.subr.bf16.mxu0 %v875
    %1266 = vmatpush1.bf16.msra.mxu0 %v874
    %1267 = vmatprep.subr.bf16.mxu0 %v882
    %1268 = vmatpush1.bf16.msra.mxu0 %v881
    %1269 = vmatprep.subr.bf16.mxu0 %v889
    %1270 = vmatpush1.bf16.msra.mxu0 %v888
    %1271 = vmatprep.subr.bf16.mxu0 %v896
    %1272 = vmatpush1.bf16.msra.mxu0 %v895
    %1273 = vmatprep.subr.bf16.mxu0 %v903
    %1274 = vmatpush1.bf16.msra.mxu0 %v902
    %1275 = vmatprep.subr.bf16.mxu0 %v910
    %1276 = vmatpush1.bf16.msra.mxu0 %v909
    %1277 = vmatprep.subr.bf16.mxu0 %v917
    %1278 = vmatpush1.bf16.msra.mxu0 %v916
    %1279 = vmatprep.subr.bf16.mxu0 %v924
    %1280 = vmatpush1.bf16.msra.mxu0 %v923
    %1281 = vmatprep.subr.bf16.mxu0 %v931
    %1282 = vmatpush1.bf16.msra.mxu0 %v930
    %1283 = vmatprep.subr.bf16.mxu0 %v938
    %1284 = vmatpush1.bf16.msra.mxu0 %v937
    %1285 = vmatprep.subr.bf16.mxu0 %v945
    %1286 = vmatpush1.bf16.msra.mxu0 %v944
    %1287 = vmatprep.subr.bf16.mxu0 %v952
    %1288 = vmatpush1.bf16.msra.mxu0 %v951
    %1289 = vmatprep.subr.bf16.mxu0 %v959
    %1290 = vmatpush1.bf16.msra.mxu0 %v958
    %1291 = vmatprep.mubr.bf16.mxu0 %v204
    %1292 = vmatmul.mubr.bf16.gmra.mrb[0].mxu0 %v203
    %v1293 = vpop.f32.mrb[0].mxu0
    %v1294 = vadd.f32 0.0, %v1293
    %v1295 = vpop.f32.mrb[0].mxu0
    %v1296 = vadd.f32 0.0, %v1295
    %v1297 = vpop.f32.mrb[0].mxu0
    %v1298 = vpop.f32.mrb[0].mxu0
    %1299 = vdwg.mxu0
    %1300 = vmatprep.subr.bf16.mxu0 %v966
    %1301 = vmatpush1.bf16.msra.mxu0 %v965
    %1302 = vmatprep.subr.bf16.mxu0 %v973
    %1303 = vmatpush1.bf16.msra.mxu0 %v972
    %1304 = vmatprep.subr.bf16.mxu0 %v980
    %1305 = vmatpush1.bf16.msra.mxu0 %v979
    %1306 = vmatprep.subr.bf16.mxu0 %v987
    %1307 = vmatpush1.bf16.msra.mxu0 %v986
    %1308 = vmatprep.subr.bf16.mxu0 %v994
    %1309 = vmatpush1.bf16.msra.mxu0 %v993
    %1310 = vmatprep.subr.bf16.mxu0 %v1166
    %1311 = vmatpush1.bf16.msra.mxu0 %v1163
    %1312 = vmatprep.subr.bf16.mxu0 0
    %1313 = vmatpush1.bf16.msra.mxu0 0
    %1314 = vmatprep.subr.bf16.mxu0 0
    %1315 = vmatpush1.bf16.msra.mxu0 0
    %1316 = vmatprep.subr.bf16.mxu0 0
    %1317 = vmatpush1.bf16.msra.mxu0 0
    %1318 = vmatprep.subr.bf16.mxu0 0
    %1319 = vmatpush1.bf16.msra.mxu0 0
    %1320 = vmatprep.subr.bf16.mxu0 0
    %1321 = vmatpush1.bf16.msra.mxu0 0
    %1322 = vmatprep.subr.bf16.mxu0 0
    %1323 = vmatpush1.bf16.msra.mxu0 0
    %1324 = vmatprep.subr.bf16.mxu0 0
    %1325 = vmatpush1.bf16.msra.mxu0 0
    %1326 = vmatprep.subr.bf16.mxu0 0
    %1327 = vmatpush1.bf16.msra.mxu0 0
    %1328 = vmatprep.subr.bf16.mxu0 0
    %1329 = vmatpush1.bf16.msra.mxu0 0
    %1330 = vmatprep.subr.bf16.mxu0 0
    %1331 = vmatpush1.bf16.msra.mxu0 0
    %1332 = vmatprep.mubr.bf16.mxu0 0
    %1333 = vmatmul.mubr.bf16.gmra.mrb[0].mxu0 %v1153
    %v1334 = vpop.f32.mrb[0].mxu0
    %v1335 = vadd.f32 %v1294, %v1334
    %v1336 = vpop.f32.mrb[0].mxu0
    %v1337 = vadd.f32 %v1296, %v1336
    %v1338 = vpop.f32.mrb[0].mxu0
    %v1339 = vpop.f32.mrb[0].mxu0
    %1340 = vdwg.mxu0
    %1341 = vmatprep.subr.bf16.mxu0 %v856
    %1342 = vmatpush1.bf16.msra.mxu0 %v855
    %1343 = vmatprep.subr.bf16.mxu0 %v863
    %1344 = vmatpush1.bf16.msra.mxu0 %v862
    %1345 = vmatprep.subr.bf16.mxu0 %v870
    %1346 = vmatpush1.bf16.msra.mxu0 %v869
    %1347 = vmatprep.subr.bf16.mxu0 %v877
    %1348 = vmatpush1.bf16.msra.mxu0 %v876
    %1349 = vmatprep.subr.bf16.mxu0 %v884
    %1350 = vmatpush1.bf16.msra.mxu0 %v883
    %1351 = vmatprep.subr.bf16.mxu0 %v891
    %1352 = vmatpush1.bf16.msra.mxu0 %v890
    %1353 = vmatprep.subr.bf16.mxu0 %v898
    %1354 = vmatpush1.bf16.msra.mxu0 %v897
    %1355 = vmatprep.subr.bf16.mxu0 %v905
    %1356 = vmatpush1.bf16.msra.mxu0 %v904
    %1357 = vmatprep.subr.bf16.mxu0 %v912
    %1358 = vmatpush1.bf16.msra.mxu0 %v911
    %1359 = vmatprep.subr.bf16.mxu0 %v919
    %1360 = vmatpush1.bf16.msra.mxu0 %v918
    %1361 = vmatprep.subr.bf16.mxu0 %v926
    %1362 = vmatpush1.bf16.msra.mxu0 %v925
    %1363 = vmatprep.subr.bf16.mxu0 %v933
    %1364 = vmatpush1.bf16.msra.mxu0 %v932
    %1365 = vmatprep.subr.bf16.mxu0 %v940
    %1366 = vmatpush1.bf16.msra.mxu0 %v939
    %1367 = vmatprep.subr.bf16.mxu0 %v947
    %1368 = vmatpush1.bf16.msra.mxu0 %v946
    %1369 = vmatprep.subr.bf16.mxu0 %v954
    %1370 = vmatpush1.bf16.msra.mxu0 %v953
    %1371 = vmatprep.subr.bf16.mxu0 %v961
    %1372 = vmatpush1.bf16.msra.mxu0 %v960
    %1373 = vmatprep.mubr.bf16.mxu0 %v204
    %1374 = vmatmul.mubr.bf16.gmra.mrb[0].mxu0 %v203
    %v1375 = vpop.f32.mrb[0].mxu0
    %v1376 = vadd.f32 0.0, %v1375
    %v1377 = vpop.f32.mrb[0].mxu0
    %v1378 = vadd.f32 0.0, %v1377
    %v1379 = vpop.f32.mrb[0].mxu0
    %v1380 = vpop.f32.mrb[0].mxu0
    %1381 = vdwg.mxu0
    %1382 = vmatprep.subr.bf16.mxu0 %v968
    %1383 = vmatpush1.bf16.msra.mxu0 %v967
    %1384 = vmatprep.subr.bf16.mxu0 %v975
    %1385 = vmatpush1.bf16.msra.mxu0 %v974
    %1386 = vmatprep.subr.bf16.mxu0 %v982
    %1387 = vmatpush1.bf16.msra.mxu0 %v981
    %1388 = vmatprep.subr.bf16.mxu0 %v989
    %1389 = vmatpush1.bf16.msra.mxu0 %v988
    %1390 = vmatprep.subr.bf16.mxu0 %v996
    %1391 = vmatpush1.bf16.msra.mxu0 %v995
    %1392 = vmatprep.subr.bf16.mxu0 %v1172
    %1393 = vmatpush1.bf16.msra.mxu0 %v1169
    %1394 = vmatprep.subr.bf16.mxu0 0
    %1395 = vmatpush1.bf16.msra.mxu0 0
    %1396 = vmatprep.subr.bf16.mxu0 0
    %1397 = vmatpush1.bf16.msra.mxu0 0
    %1398 = vmatprep.subr.bf16.mxu0 0
    %1399 = vmatpush1.bf16.msra.mxu0 0
    %1400 = vmatprep.subr.bf16.mxu0 0
    %1401 = vmatpush1.bf16.msra.mxu0 0
    %1402 = vmatprep.subr.bf16.mxu0 0
    %1403 = vmatpush1.bf16.msra.mxu0 0
    %1404 = vmatprep.subr.bf16.mxu0 0
    %1405 = vmatpush1.bf16.msra.mxu0 0
    %1406 = vmatprep.subr.bf16.mxu0 0
    %1407 = vmatpush1.bf16.msra.mxu0 0
    %1408 = vmatprep.subr.bf16.mxu0 0
    %1409 = vmatpush1.bf16.msra.mxu0 0
    %1410 = vmatprep.subr.bf16.mxu0 0
    %1411 = vmatpush1.bf16.msra.mxu0 0
    %1412 = vmatprep.subr.bf16.mxu0 0
    %1413 = vmatpush1.bf16.msra.mxu0 0
    %1414 = vmatprep.mubr.bf16.mxu0 0
    %1415 = vmatmul.mubr.bf16.gmra.mrb[0].mxu0 %v1153
    %v1416 = vpop.f32.mrb[0].mxu0
    %v1417 = vadd.f32 %v1376, %v1416
    %v1418 = vpop.f32.mrb[0].mxu0
    %v1419 = vadd.f32 %v1378, %v1418
    %v1420 = vpop.f32.mrb[0].mxu0
    %v1421 = vpop.f32.mrb[0].mxu0
    %1422 = vdwg.mxu0
    %1423 = vmatprep.subr.bf16.mxu0 0
    %1424 = vmatpush1.bf16.msra.mxu0 %v857
    %1425 = vmatprep.subr.bf16.mxu0 0
    %1426 = vmatpush1.bf16.msra.mxu0 %v864
    %1427 = vmatprep.subr.bf16.mxu0 0
    %1428 = vmatpush1.bf16.msra.mxu0 %v871
    %1429 = vmatprep.subr.bf16.mxu0 0
    %1430 = vmatpush1.bf16.msra.mxu0 %v878
    %1431 = vmatprep.subr.bf16.mxu0 0
    %1432 = vmatpush1.bf16.msra.mxu0 %v885
    %1433 = vmatprep.subr.bf16.mxu0 0
    %1434 = vmatpush1.bf16.msra.mxu0 %v892
    %1435 = vmatprep.subr.bf16.mxu0 0
    %1436 = vmatpush1.bf16.msra.mxu0 %v899
    %1437 = vmatprep.subr.bf16.mxu0 0
    %1438 = vmatpush1.bf16.msra.mxu0 %v906
    %1439 = vmatprep.subr.bf16.mxu0 0
    %1440 = vmatpush1.bf16.msra.mxu0 %v913
    %1441 = vmatprep.subr.bf16.mxu0 0
    %1442 = vmatpush1.bf16.msra.mxu0 %v920
    %1443 = vmatprep.subr.bf16.mxu0 0
    %1444 = vmatpush1.bf16.msra.mxu0 %v927
    %1445 = vmatprep.subr.bf16.mxu0 0
    %1446 = vmatpush1.bf16.msra.mxu0 %v934
    %1447 = vmatprep.subr.bf16.mxu0 0
    %1448 = vmatpush1.bf16.msra.mxu0 %v941
    %1449 = vmatprep.subr.bf16.mxu0 0
    %1450 = vmatpush1.bf16.msra.mxu0 %v948
    %1451 = vmatprep.subr.bf16.mxu0 0
    %1452 = vmatpush1.bf16.msra.mxu0 %v955
    %1453 = vmatprep.subr.bf16.mxu0 0
    %1454 = vmatpush1.bf16.msra.mxu0 %v962
    %1455 = vmatprep.mubr.bf16.mxu0 %v204
    %1456 = vmatmul.mubr.bf16.gmra.mrb[0].mxu0 %v203
    %v1457 = vpop.f32.mrb[0].mxu0
    %v1458 = vadd.f32 0.0, %v1457
    %v1459 = vpop.f32.mrb[0].mxu0
    %v1460 = vpop.f32.mrb[0].mxu0
    %v1461 = vpop.f32.mrb[0].mxu0
    %1462 = vdwg.mxu0
    %1463 = vmatprep.subr.bf16.mxu0 0
    %1464 = vmatpush1.bf16.msra.mxu0 %v969
    %1465 = vmatprep.subr.bf16.mxu0 0
    %1466 = vmatpush1.bf16.msra.mxu0 %v976
    %1467 = vmatprep.subr.bf16.mxu0 0
    %1468 = vmatpush1.bf16.msra.mxu0 %v983
    %1469 = vmatprep.subr.bf16.mxu0 0
    %1470 = vmatpush1.bf16.msra.mxu0 %v990
    %1471 = vmatprep.subr.bf16.mxu0 0
    %1472 = vmatpush1.bf16.msra.mxu0 %v997
    %1473 = vmatprep.subr.bf16.mxu0 0
    %1474 = vmatpush1.bf16.msra.mxu0 %v1175
    %1475 = vmatprep.subr.bf16.mxu0 0
    %1476 = vmatpush1.bf16.msra.mxu0 0
    %1477 = vmatprep.subr.bf16.mxu0 0
    %1478 = vmatpush1.bf16.msra.mxu0 0
    %1479 = vmatprep.subr.bf16.mxu0 0
    %1480 = vmatpush1.bf16.msra.mxu0 0
    %1481 = vmatprep.subr.bf16.mxu0 0
    %1482 = vmatpush1.bf16.msra.mxu0 0
    %1483 = vmatprep.subr.bf16.mxu0 0
    %1484 = vmatpush1.bf16.msra.mxu0 0
    %1485 = vmatprep.subr.bf16.mxu0 0
    %1486 = vmatpush1.bf16.msra.mxu0 0
    %1487 = vmatprep.subr.bf16.mxu0 0
    %1488 = vmatpush1.bf16.msra.mxu0 0
    %1489 = vmatprep.subr.bf16.mxu0 0
    %1490 = vmatpush1.bf16.msra.mxu0 0
    %1491 = vmatprep.subr.bf16.mxu0 0
    %1492 = vmatpush1.bf16.msra.mxu0 0
    %1493 = vmatprep.subr.bf16.mxu0 0
    %1494 = vmatpush1.bf16.msra.mxu0 0
    %1495 = vmatprep.mubr.bf16.mxu0 0
    %1496 = vmatmul.mubr.bf16.gmra.mrb[0].mxu0 %v1153
    %v1497 = vpop.f32.mrb[0].mxu0
    %v1498 = vadd.f32 %v1458, %v1497
    %v1499 = vpop.f32.mrb[0].mxu0
    %v1500 = vpop.f32.mrb[0].mxu0
    %v1501 = vpop.f32.mrb[0].mxu0
    %1502 = vdwg.mxu0
    %vm1503 = vcmask 408576
    %1504 = vst.msk [vmem:[#allocation2] sm:$0xff] %vm1503, %v1253
    %1506 = vrot.lane.b32.xlu0 %v1253, 78
    %v1507 = vpop.permute.xlu0 %1506
    %1509 = vst.msk [vmem:[#allocation2 + $0x8] sm:$0xff] %vm1503, %v1507
    %1511 = vrot.lane.b32.xlu0 %v1253, 28
    %v1512 = vpop.permute.xlu0 %1511
    %1513 = vrot.lane.b32.xlu0 %v1255, 28
    %v1514 = vpop.permute.xlu0 %1513
    %vm1515 = vcmask 228352
    %v1516 = vsel %vm1515, %v1512, %v1514
    %1518 = vst.msk [vmem:[#allocation2 + $0x10] sm:$0xff] %vm1503, %v1516
    %1519 = vrot.lane.b32.xlu0 %v1255, 106
    %v1520 = vpop.permute.xlu0 %1519
    %1522 = vst.msk [vmem:[#allocation2 + $0x18] sm:$0xff] %vm1503, %v1520
    %1523 = vrot.lane.b32.xlu0 %v1255, 56
    %v1524 = vpop.permute.xlu0 %1523
    %1526 = vst.msk [vmem:[#allocation2 + $0x20] sm:$0xff] %vm1503, %v1524
    %1528 = vrot.lane.b32.xlu0 %v1255, 6
    %v1529 = vpop.permute.xlu0 %1528
    %1530 = vrot.lane.b32.xlu0 %v1335, 6
    %v1531 = vpop.permute.xlu0 %1530
    %vm1532 = vcmask 48128
    %v1533 = vsel %vm1532, %v1529, %v1531
    %1535 = vst.msk [vmem:[#allocation2 + $0x28] sm:$0xff] %vm1503, %v1533
    %1536 = vrot.lane.b32.xlu0 %v1335, 84
    %v1537 = vpop.permute.xlu0 %1536
    %1539 = vst.msk [vmem:[#allocation2 + $0x30] sm:$0xff] %vm1503, %v1537
    %1541 = vrot.lane.b32.xlu0 %v1335, 34
    %v1542 = vpop.permute.xlu0 %1541
    %1543 = vrot.lane.b32.xlu0 %v1337, 34
    %v1544 = vpop.permute.xlu0 %1543
    %vm1545 = vcmask 277504
    %v1546 = vsel %vm1545, %v1542, %v1544
    %1548 = vst.msk [vmem:[#allocation2 + $0x38] sm:$0xff] %vm1503, %v1546
    %1549 = vrot.lane.b32.xlu0 %v1337, 112
    %v1550 = vpop.permute.xlu0 %1549
    %1552 = vst.msk [vmem:[#allocation2 + $0x40] sm:$0xff] %vm1503, %v1550
    %1553 = vrot.lane.b32.xlu0 %v1337, 62
    %v1554 = vpop.permute.xlu0 %1553
    %1556 = vst.msk [vmem:[#allocation2 + $0x48] sm:$0xff] %vm1503, %v1554
    %1558 = vrot.lane.b32.xlu0 %v1337, 12
    %v1559 = vpop.permute.xlu0 %1558
    %1560 = vrot.lane.b32.xlu0 %v1417, 12
    %v1561 = vpop.permute.xlu0 %1560
    %vm1562 = vcmask 97280
    %v1563 = vsel %vm1562, %v1559, %v1561
    %1565 = vst.msk [vmem:[#allocation2 + $0x50] sm:$0xff] %vm1503, %v1563
    %1566 = vrot.lane.b32.xlu0 %v1417, 90
    %v1567 = vpop.permute.xlu0 %1566
    %1569 = vst.msk [vmem:[#allocation2 + $0x58] sm:$0xff] %vm1503, %v1567
    %1571 = vrot.lane.b32.xlu0 %v1417, 40
    %v1572 = vpop.permute.xlu0 %1571
    %1573 = vrot.lane.b32.xlu0 %v1419, 40
    %v1574 = vpop.permute.xlu0 %1573
    %vm1575 = vcmask 326656
    %v1576 = vsel %vm1575, %v1572, %v1574
    %1578 = vst.msk [vmem:[#allocation2 + $0x60] sm:$0xff] %vm1503, %v1576
    %1579 = vrot.lane.b32.xlu0 %v1419, 118
    %v1580 = vpop.permute.xlu0 %1579
    %1582 = vst.msk [vmem:[#allocation2 + $0x68] sm:$0xff] %vm1503, %v1580
    %1583 = vrot.lane.b32.xlu0 %v1419, 68
    %v1584 = vpop.permute.xlu0 %1583
    %1586 = vst.msk [vmem:[#allocation2 + $0x70] sm:$0xff] %vm1503, %v1584
    %1588 = vrot.lane.b32.xlu0 %v1419, 18
    %v1589 = vpop.permute.xlu0 %1588
    %1590 = vrot.lane.b32.xlu0 %v1498, 18
    %v1591 = vpop.permute.xlu0 %1590
    %vm1592 = vcmask 146432
    %v1593 = vsel %vm1592, %v1589, %v1591
    %1595 = vst.msk [vmem:[#allocation2 + $0x78] sm:$0xff] %vm1503, %v1593
    %v1596 = vld [vmem:[#allocation2] sm:$0xff]
    %v1597 = vld [vmem:[#allocation2 + $0x8] sm:$0xff]
    %v1598 = vld [vmem:[#allocation2 + $0x10] sm:$0xff]
    %v1599 = vld [vmem:[#allocation2 + $0x18] sm:$0xff]
    %v1600 = vld [vmem:[#allocation2 + $0x20] sm:$0xff]
    %v1601 = vld [vmem:[#allocation2 + $0x28] sm:$0xff]
    %v1602 = vld [vmem:[#allocation2 + $0x30] sm:$0xff]
    %v1603 = vld [vmem:[#allocation2 + $0x38] sm:$0xff]
    %v1604 = vld [vmem:[#allocation2 + $0x40] sm:$0xff]
    %v1605 = vld [vmem:[#allocation2 + $0x48] sm:$0xff]
    %v1606 = vld [vmem:[#allocation2 + $0x50] sm:$0xff]
    %v1607 = vld [vmem:[#allocation2 + $0x58] sm:$0xff]
    %v1608 = vld [vmem:[#allocation2 + $0x60] sm:$0xff]
    %v1609 = vld [vmem:[#allocation2 + $0x68] sm:$0xff]
    %v1610 = vld [vmem:[#allocation2 + $0x70] sm:$0xff]
    %v1611 = vld [vmem:[#allocation2 + $0x78] sm:$0xff]
    %v1612 = vpack.c.bf16 %v1597, %v1596
    %v1613 = vpack.c.bf16 %v1599, %v1598
    %v1614 = vpack.c.bf16 %v1601, %v1600
    %v1615 = vpack.c.bf16 %v1603, %v1602
    %v1616 = vpack.c.bf16 %v1605, %v1604
    %v1617 = vpack.c.bf16 %v1607, %v1606
    %v1618 = vpack.c.bf16 %v1609, %v1608
    %v1619 = vpack.c.bf16 %v1611, %v1610
    %v1620 = vld [vmem:[%s6] sm:$0xf]
    %v1621 = vld [vmem:[%s6 + $0x4] sm:$0xf]
    %v1622 = vld [vmem:[%s7] sm:$0xff]
    %v1623 = vld [vmem:[%s7 + $0x8] sm:$0xff]
    %1625 = vset.pattern.permute.xlu0 0
    %1626 = vperm.xlu0 %1625, %v1622
    %v1627 = vpop.permute.xlu0 %1626
    %1630 = vset.pattern.permute.xlu0 0
    %1631 = vperm.xlu0 %1630, %v1623
    %v1632 = vpop.permute.xlu0 %1631
    %v1636 = vunpack.c.l.b16 %v1620
    %v1637 = vunpack.c.l.b16 %v1621
    %v1638 = vpack.c.b16 %v1637, %v1636
    %1640 = vmatprep.subr.bf16.mxu0 0
    %1641 = vmatpush1.bf16.msra.mxu0 %v1612
    %1642 = vmatprep.subr.bf16.mxu0 0
    %1643 = vmatpush1.bf16.msra.mxu0 %v1613
    %1644 = vmatprep.subr.bf16.mxu0 0
    %1645 = vmatpush1.bf16.msra.mxu0 %v1614
    %1646 = vmatprep.subr.bf16.mxu0 0
    %1647 = vmatpush1.bf16.msra.mxu0 %v1615
    %1648 = vmatprep.subr.bf16.mxu0 0
    %1649 = vmatpush1.bf16.msra.mxu0 %v1616
    %1650 = vmatprep.subr.bf16.mxu0 0
    %1651 = vmatpush1.bf16.msra.mxu0 %v1617
    %1652 = vmatprep.subr.bf16.mxu0 0
    %1653 = vmatpush1.bf16.msra.mxu0 %v1618
    %1654 = vmatprep.subr.bf16.mxu0 0
    %1655 = vmatpush1.bf16.msra.mxu0 %v1619
    %1656 = vmatprep.subr.bf16.mxu0 0
    %1657 = vmatpush1.bf16.msra.mxu0 0
    %1658 = vmatprep.subr.bf16.mxu0 0
    %1659 = vmatpush1.bf16.msra.mxu0 0
    %1660 = vmatprep.subr.bf16.mxu0 0
    %1661 = vmatpush1.bf16.msra.mxu0 0
    %1662 = vmatprep.subr.bf16.mxu0 0
    %1663 = vmatpush1.bf16.msra.mxu0 0
    %1664 = vmatprep.subr.bf16.mxu0 0
    %1665 = vmatpush1.bf16.msra.mxu0 0
    %1666 = vmatprep.subr.bf16.mxu0 0
    %1667 = vmatpush1.bf16.msra.mxu0 0
    %1668 = vmatprep.subr.bf16.mxu0 0
    %1669 = vmatpush1.bf16.msra.mxu0 0
    %1670 = vmatprep.subr.bf16.mxu0 0
    %1671 = vmatpush1.bf16.msra.mxu0 0
    %1672 = vmatprep.mubr.bf16.mxu0 0
    %1673 = vmatmul.mubr.bf16.gmra.mrb[0].mxu0 %v1638
    %v1674 = vpop.f32.mrb[0].mxu0
    %v1675 = vadd.f32 %v1627, %v1674
    %v1676 = vpop.f32.mrb[0].mxu0
    %v1677 = vpop.f32.mrb[0].mxu0
    %v1678 = vadd.f32 %v1632, %v1677
    %v1679 = vpop.f32.mrb[0].mxu0
    %1680 = vdwg.mxu0
    %v1681 = vld [vmem:[%s8] sm:$0xff]
    %v1682 = vld [vmem:[%s8 + $0x8] sm:$0xff]
    %v1683 = vld [vmem:[%s9] sm:$0xff]
    %v1684 = vld [vmem:[%s9 + $0x8] sm:$0xff]
    %v1685 = vsel %vm1503, %v1675, 0.0
    %1686 = vadd.xlane.f32.xlu0 %v1685
    %v1687 = vpop.xlane.xlu0 %1686
    %v1688 = vsel %vm1503, %v1678, 0.0
    %1689 = vadd.xlane.f32.xlu0 %v1688
    %v1690 = vpop.xlane.xlu0 %1689
    %v1691 = vmul.f32 %v1687, 0.02
    %v1692 = vmul.f32 %v1690, 0.02
    %v1693 = vsub.f32 %v1675, %v1691
    %v1694 = vsub.f32 %v1678, %v1692
    %v1695 = vmul.f32 %v1693, %v1693
    %v1696 = vmul.f32 %v1694, %v1694
    %v1697 = vsel %vm1503, %v1695, 0.0
    %1698 = vadd.xlane.f32.xlu0 %v1697
    %v1699 = vpop.xlane.xlu0 %1698
    %v1700 = vsel %vm1503, %v1696, 0.0
    %1701 = vadd.xlane.f32.xlu0 %v1700
    %v1702 = vpop.xlane.xlu0 %1701
    %v1703 = vmul.f32 %v1699, 0.02
    %v1704 = vmul.f32 %v1702, 0.02
    %v1705 = vadd.f32 %v1703, 1e-05
    %v1706 = vadd.f32 %v1704, 1e-05
    %v1707 = vrsqrt.pop %v1705
    %v1708 = vrsqrt.pop %v1706
    %v1709 = vmul.f32 %v1681, %v1707
    %v1710 = vmul.f32 %v1682, %v1708
    %1712 = vset.pattern.permute.xlu0 0
    %1713 = vperm.xlu0 %1712, %v1709
    %v1714 = vpop.permute.xlu0 %1713
    %1717 = vset.pattern.permute.xlu0 0
    %1718 = vperm.xlu0 %1717, %v1710
    %v1719 = vpop.permute.xlu0 %1718
    %v1721 = vmul.f32 %v1714, %v1693
    %v1722 = vmul.f32 %v1719, %v1694
    %1724 = vset.pattern.permute.xlu0 0
    %1725 = vperm.xlu0 %1724, %v1683
    %v1726 = vpop.permute.xlu0 %1725
    %1729 = vset.pattern.permute.xlu0 0
    %1730 = vperm.xlu0 %1729, %v1684
    %v1731 = vpop.permute.xlu0 %1730
    %v1733 = vadd.f32 %v1721, %v1726
    %v1734 = vadd.f32 %v1722, %v1731
    %v1735 = vmul.f32 %v1733, 0.2
    %v1736 = vmul.f32 %v1734, 0.2
    %v1737 = vmax.f32 %v1733, %v1735
    %v1738 = vmax.f32 %v1734, %v1736
    %v1739 = vld [vmem:[%s10] sm:$0xff]
    %v1740 = vld [vmem:[%s10 + $0x8] sm:$0xff]
    %v1741 = vmul.f32 %v1737, %v1739
    %v1742 = vmul.f32 %v1738, %v1740
    %vm1743 = vcmask 203776
    %v1744 = vsel %vm1743, %v1741, 0.0
    %1745 = vadd.xlane.f32.xlu0 %v1744
    %v1746 = vpop.xlane.xlu0 %1745
    %v1747 = vsel %vm1743, %v1742, 0.0
    %1748 = vadd.xlane.f32.xlu0 %v1747
    %v1749 = vpop.xlane.xlu0 %1748
    %v1750 = vadd.f32 %v1746, %v1749
    %v1751 = vrot.slane %v1750, 4
    %v1752 = vadd.f32 %v1750, %v1751
    %v1753 = vrot.slane %v1752, 2
    %v1754 = vadd.f32 %v1752, %v1753
    %v1755 = vrot.slane %v1754, 1
    %v1756 = vadd.f32 %v1754, %v1755
    %v1757 = vld [vmem:[#allocation3] sm:$0x1]
    %v1758 = vadd.f32 %v1756, %v1757
    %vm1759 = vcmask 0
    %1760 = vst.msk [vmem:[#allocation4] sm:$0x1] %vm1759, %v1758
    %1763 = vrot.lane.b32.xlu0 %v1741, 103
    %v1764 = vpop.permute.xlu0 %1763
    %1765 = vrot.lane.b32.xlu0 %v1742, 103
    %v1766 = vpop.permute.xlu0 %1765
    %v1769 = vsel %vm1743, %v1764, 0.0
    %1770 = vadd.xlane.f32.xlu0 %v1769
    %v1771 = vpop.xlane.xlu0 %1770
    %v1772 = vsel %vm1743, %v1766, 0.0
    %1773 = vadd.xlane.f32.xlu0 %v1772
    %v1774 = vpop.xlane.xlu0 %1773
    %v1775 = vadd.f32 %v1771, %v1774
    %v1776 = vrot.slane %v1775, 4
    %v1777 = vadd.f32 %v1775, %v1776
    %v1778 = vrot.slane %v1777, 2
    %v1779 = vadd.f32 %v1777, %v1778
    %v1780 = vrot.slane %v1779, 1
    %v1781 = vadd.f32 %v1779, %v1780
    %v1782 = vld [vmem:[#allocation3] sm:$0x1]
    %v1783 = vadd.f32 %v1781, %v1782
    %v1785 = vlaneseq
    %v1786 = vshrl.u32 %v1785, 7
    %v1787 = vsub.s32 0, %v1786
    %v1788 = vrot.slane %v1783, %v1787
    %1789 = vrot.lane.b32.xlu0 %v1788, 1
    %v1790 = vpop.permute.xlu0 %1789
    %vm1792 = vcmask 8200
    %1793 = vst.msk [vmem:[#allocation4] sm:$0x1] %vm1792, %v1790
    // Predicated region
    $region50: #{tpu_custom_call.1} parent=1 // pred_check
      _
    $region51: #{tpu_custom_call.1} parent=1 // pred_check_branch
      %1795 = sbr.rel (0) target = $region53
    $region52: #{tpu_custom_call.1} parent=1 // pred_region
      %s1797 = ssub.s32 16, 16
      %1798 = vsyncadd [#allocation5], %s1797
      %s1800 = sshll.u32 [#allocation4], 4
      %s1801 = int_to_ptr.vmem [resolvable:$true] %s1800
      %1803 = dma.vmem_to_hbm [thread:$0]  %s1801, 16, %s12, [#allocation5]
    $region53: #{tpu_custom_call.1} parent=1 // pred_fallthru
      _
    // Predicated region
    $region54: #{tpu_custom_call.1} parent=1 // pred_check
      _
    $region55: #{tpu_custom_call.1} parent=1 // pred_check_branch
      %1805 = sbr.rel (0) target = $region57
    $region56: #{tpu_custom_call.1} parent=1 // pred_region
      %1806 = dma.done [#allocation5], 16
    $region57: #{tpu_custom_call.1} parent=1 // pred_fallthru
      _
    %1807 = vsyncpa [#allocation5], 1

</llo_original>
